<compile_context>
chip_gen: v6e
topology: v6e:2x2x1
jax: 0.10.0
libtpu: 0.0.40
codegen_flags: <defaults>
</compile_context>

<pallas_src>
import math
import functools

import jax
import jax.numpy as jnp
from jax.experimental import pallas as pl
from jax.experimental.pallas import tpu as pltpu


def _attn_kernel(x_ref, wq_ref, wk_ref, wv_ref, wo_ref, bo_ref, bias_ref, o_ref,
                 *, num_heads, compute_dtype):
    """Single-shot kernel over all B*T tokens.

    x_ref    : (N, D)        N = B*T tokens
    wq/k/v   : (NH, D, DH)   per-head projection weights (x @ W layout)
    wo_ref   : (NH, DH, D)   per-head rows of the output projection
    bo_ref   : (1, D)        output bias (f32)
    bias_ref : (N, N)        additive causal + batch-block mask (0 / -1e30, f32)
    o_ref    : (N, D)        output
    """
    N, D = x_ref.shape
    NH = num_heads
    DH = D // NH
    scale = 1.0 / math.sqrt(DH)

    x = x_ref[...]
    xc = x.astype(compute_dtype)                 # MXU operand for K/V projections
    xq = (x * scale).astype(compute_dtype)       # softmax scale folded into the Q operand
    bias = bias_ref[...]                         # hoisted: loaded once, reused per head

    acc = jnp.zeros((N, D), jnp.float32)
    for h in range(NH):                          # static unroll; no lane slices / concat
        q = jnp.dot(xq, wq_ref[h], preferred_element_type=jnp.float32)   # (N, DH)
        k = jnp.dot(xc, wk_ref[h], preferred_element_type=jnp.float32)   # (N, DH)
        v = jnp.dot(xc, wv_ref[h], preferred_element_type=jnp.float32)   # (N, DH)

        # scores: contract the head dim of q and k directly (no explicit transpose)
        s = jax.lax.dot_general(
            q.astype(compute_dtype), k.astype(compute_dtype),
            dimension_numbers=(((1,), (1,)), ((), ())),
            preferred_element_type=jnp.float32)                          # (N, N)
        s = s + bias                                                     # causal + batch mask

        # numerically-stable softmax; divide goes to the EUP reciprocal slot
        s = s - jnp.max(s, axis=-1, keepdims=True)
        p = jnp.exp(s)
        p = p * pl.reciprocal(jnp.sum(p, axis=-1, keepdims=True), approx=True)

        y = jnp.dot(p.astype(compute_dtype), v.astype(compute_dtype),
                    preferred_element_type=jnp.float32)                  # (N, DH)
        # fold this head straight into the output projection (replaces concat)
        acc = acc + jnp.dot(y.astype(compute_dtype), wo_ref[h],
                            preferred_element_type=jnp.float32)          # (N, D)

    o_ref[...] = (acc + bo_ref[...]).astype(o_ref.dtype)


def causal_self_attention(x, w_qkv, w_out, b_out, *, num_heads,
                          compute_dtype=jnp.bfloat16):
    """x: (B, T, D); w_qkv: (D, 3D); w_out: (D, D); b_out: (1, D).

    Weights are in "x @ W" layout (transpose of the torch nn.Linear weight).
    compute_dtype sets the MXU operand precision; accumulation is always f32.
    """
    B, T, D = x.shape
    NH = num_heads
    assert D % NH == 0, "num_heads must divide embed_dim"
    DH = D // NH
    N = B * T

    # ---- parameter / mask prep (layout only; zero in-kernel cost) ----------
    wq, wk, wv = jnp.split(w_qkv, 3, axis=-1)                            # (D, D) each
    wq = wq.reshape(D, NH, DH).transpose(1, 0, 2).astype(compute_dtype)  # (NH, D, DH)
    wk = wk.reshape(D, NH, DH).transpose(1, 0, 2).astype(compute_dtype)
    wv = wv.reshape(D, NH, DH).transpose(1, 0, 2).astype(compute_dtype)
    wo = w_out.reshape(NH, DH, D).astype(compute_dtype)                  # (NH, DH, D)
    bo = b_out.astype(jnp.float32)                                       # (1, D)

    # causal mask within each sequence + block-diagonal batch separation,
    # as a finite additive bias (NaN-safe even for fully-masked tiles).
    pos = jnp.arange(N, dtype=jnp.int32)
    batch_id = pos // T
    keep = (batch_id[:, None] == batch_id[None, :]) & (pos[:, None] >= pos[None, :])
    attn_bias = jnp.where(keep, 0.0, -1e30).astype(jnp.float32)          # (N, N)

    kernel = functools.partial(_attn_kernel, num_heads=NH,
                               compute_dtype=compute_dtype)
    vmem = pl.BlockSpec(memory_space=pltpu.MemorySpace.VMEM)             # whole array in VMEM
    out = pl.pallas_call(
        kernel,
        out_shape=jax.ShapeDtypeStruct((N, D), x.dtype),
        in_specs=[vmem] * 7,
        out_specs=vmem,
    )(x.reshape(N, D), wq, wk, wv, wo, bo, attn_bias)
    return out.reshape(B, T, D)


def _reference(x, w_qkv, w_out, b_out, num_heads):
    """Pure-JAX f32 reference mirroring the PyTorch forward (eval mode)."""
    B, T, D = x.shape
    NH = num_heads
    DH = D // NH
    qkv = x @ w_qkv
    q, k, v = jnp.split(qkv, 3, axis=-1)
    q = q.reshape(B, T, NH, DH).transpose(0, 2, 1, 3)
    k = k.reshape(B, T, NH, DH).transpose(0, 2, 1, 3)
    v = v.reshape(B, T, NH, DH).transpose(0, 2, 1, 3)
    att = (q @ jnp.swapaxes(k, -2, -1)) * (1.0 / math.sqrt(DH))
    mask = jnp.tril(jnp.ones((T, T), dtype=bool))[None, None]
    att = jnp.where(mask, att, -jnp.inf)
    att = jax.nn.softmax(att, axis=-1)
    y = att @ v
    y = y.transpose(0, 2, 1, 3).reshape(B, T, D)
    return y @ w_out + b_out


if __name__ == "__main__":
    # Shapes consistent with the module: B=2, T=8 (<= context_length=16),
    # embed_dim D=32, num_heads=4.
    B, T, D = 2, 8, 32
    NUM_HEADS = 4
    CONTEXT_LENGTH = 16
    assert T <= CONTEXT_LENGTH and D % NUM_HEADS == 0

    key = jax.random.PRNGKey(0)
    kx, kqkv, kwo, kbo = jax.random.split(key, 4)

    x = jax.random.normal(kx, (B, T, D), dtype=jnp.float32)
    # torch Linear weight is (out, in); store the transpose so kernel does x @ W.
    w_qkv = jax.random.normal(kqkv, (D, 3 * D), dtype=jnp.float32) * (1.0 / math.sqrt(D))
    w_out = jax.random.normal(kwo, (D, D), dtype=jnp.float32) * (1.0 / math.sqrt(D))
    b_out = jax.random.normal(kbo, (1, D), dtype=jnp.float32) * 0.01

    ref = _reference(x, w_qkv, w_out, b_out, NUM_HEADS)

    # f32 compute path: near-exact parity (tolerance absorbs approx reciprocal).
    out_f32 = causal_self_attention(x, w_qkv, w_out, b_out, num_heads=NUM_HEADS,
                                    compute_dtype=jnp.float32)
    out_f32 = jax.block_until_ready(out_f32)
    assert out_f32.shape == (B, T, D)
    assert jnp.allclose(out_f32, ref, atol=1e-2, rtol=1e-2), "f32 path mismatch vs reference"

    # Default bf16 MXU-operand path (per perf review) — loosened tolerance for bf16 operands.
    out_bf16 = causal_self_attention(x, w_qkv, w_out, b_out, num_heads=NUM_HEADS)
    out_bf16 = jax.block_until_ready(out_bf16)
    assert out_bf16.shape == (B, T, D)
    assert jnp.allclose(out_bf16, ref, atol=5e-2, rtol=5e-2), "bf16 path mismatch vs reference"

    print("KERNEL_OK")
</pallas_src>

<mosaic_0001>
module attributes {stable_mosaic.version = 11 : i64} {
  func.func @_attn_kernel(%arg0: memref<16x32xf32, #tpu.memory_space<vmem>>, %arg1: memref<4x32x8xf32, #tpu.memory_space<vmem>>, %arg2: memref<4x32x8xf32, #tpu.memory_space<vmem>>, %arg3: memref<4x32x8xf32, #tpu.memory_space<vmem>>, %arg4: memref<4x8x32xf32, #tpu.memory_space<vmem>>, %arg5: memref<1x32xf32, #tpu.memory_space<vmem>>, %arg6: memref<16x16xf32, #tpu.memory_space<vmem>>, %arg7: memref<16x32xf32, #tpu.memory_space<vmem>>) attributes {dimension_semantics = [], scalar_prefetch = 0 : i64, scratch_operands = 0 : i64, tpu.core_type = #tpu.core_type<tc>} {
    %c0 = arith.constant 0 : index
    %c0_0 = arith.constant 0 : index
    %0 = vector.load %arg0[%c0, %c0_0] : memref<16x32xf32, #tpu.memory_space<vmem>>, vector<16x32xf32>
    %cst = arith.constant 0.353553385 : f32
    %1 = vector.broadcast %cst : f32 to vector<16x32xf32>
    %2 = arith.mulf %0, %1 : vector<16x32xf32>
    %c0_1 = arith.constant 0 : index
    %c0_2 = arith.constant 0 : index
    %3 = vector.load %arg6[%c0_1, %c0_2] : memref<16x16xf32, #tpu.memory_space<vmem>>, vector<16x16xf32>
    %cst_3 = arith.constant 0.000000e+00 : f32
    %4 = vector.broadcast %cst_3 : f32 to vector<16x32xf32>
    %c0_4 = arith.constant 0 : index
    %c0_5 = arith.constant 0 : index
    %c0_6 = arith.constant 0 : index
    %5 = vector.load %arg1[%c0_4, %c0_5, %c0_6] : memref<4x32x8xf32, #tpu.memory_space<vmem>>, vector<1x32x8xf32>
    %6 = vector.shape_cast %5 : vector<1x32x8xf32> to vector<32x8xf32>
    %cst_7 = arith.constant dense<0.000000e+00> : vector<16x8xf32>
    %7 = tpu.matmul %2, %6, %cst_7 {dimension_numbers = #tpu.dot_dimension_numbers<[1], [0], [0], [1], [0, 0, 1, 1], [], []>} : vector<16x32xf32>, vector<32x8xf32>, vector<16x8xf32> -> vector<16x8xf32>
    %c0_8 = arith.constant 0 : index
    %c0_9 = arith.constant 0 : index
    %c0_10 = arith.constant 0 : index
    %8 = vector.load %arg2[%c0_8, %c0_9, %c0_10] : memref<4x32x8xf32, #tpu.memory_space<vmem>>, vector<1x32x8xf32>
    %9 = vector.shape_cast %8 : vector<1x32x8xf32> to vector<32x8xf32>
    %cst_11 = arith.constant dense<0.000000e+00> : vector<16x8xf32>
    %10 = tpu.matmul %0, %9, %cst_11 {dimension_numbers = #tpu.dot_dimension_numbers<[1], [0], [0], [1], [0, 0, 1, 1], [], []>} : vector<16x32xf32>, vector<32x8xf32>, vector<16x8xf32> -> vector<16x8xf32>
    %c0_12 = arith.constant 0 : index
    %c0_13 = arith.constant 0 : index
    %c0_14 = arith.constant 0 : index
    %11 = vector.load %arg3[%c0_12, %c0_13, %c0_14] : memref<4x32x8xf32, #tpu.memory_space<vmem>>, vector<1x32x8xf32>
    %12 = vector.shape_cast %11 : vector<1x32x8xf32> to vector<32x8xf32>
    %cst_15 = arith.constant dense<0.000000e+00> : vector<16x8xf32>
    %13 = tpu.matmul %0, %12, %cst_15 {dimension_numbers = #tpu.dot_dimension_numbers<[1], [0], [0], [1], [0, 0, 1, 1], [], []>} : vector<16x32xf32>, vector<32x8xf32>, vector<16x8xf32> -> vector<16x8xf32>
    %cst_16 = arith.constant dense<0.000000e+00> : vector<16x16xf32>
    %14 = tpu.matmul %7, %10, %cst_16 {dimension_numbers = #tpu.dot_dimension_numbers<[1], [1], [0], [0], [0, 0, 1, 0], [], []>} : vector<16x8xf32>, vector<16x8xf32>, vector<16x16xf32> -> vector<16x16xf32>
    %15 = arith.addf %14, %3 : vector<16x16xf32>
    %cst_17 = arith.constant dense<0xFF800000> : vector<16xf32>
    %16 = vector.multi_reduction <maximumf>, %15, %cst_17 [1] : vector<16x16xf32> to vector<16xf32>
    %17 = vector.shape_cast %16 : vector<16xf32> to vector<16x1xf32>
    %18 = vector.broadcast %17 : vector<16x1xf32> to vector<16x16xf32>
    %19 = arith.subf %15, %18 : vector<16x16xf32>
    %20 = math.exp %19 : vector<16x16xf32>
    %cst_18 = arith.constant dense<0.000000e+00> : vector<16xf32>
    %21 = vector.multi_reduction <add>, %20, %cst_18 [1] : vector<16x16xf32> to vector<16xf32>
    %22 = vector.shape_cast %21 : vector<16xf32> to vector<16x1xf32>
    %23 = tpu.reciprocal %22 {approx = true} : vector<16x1xf32> -> vector<16x1xf32>
    %24 = vector.broadcast %23 : vector<16x1xf32> to vector<16x16xf32>
    %25 = arith.mulf %20, %24 : vector<16x16xf32>
    %cst_19 = arith.constant dense<0.000000e+00> : vector<16x8xf32>
    %26 = tpu.matmul %25, %13, %cst_19 {dimension_numbers = #tpu.dot_dimension_numbers<[1], [0], [0], [1], [0, 0, 1, 1], [], []>} : vector<16x16xf32>, vector<16x8xf32>, vector<16x8xf32> -> vector<16x8xf32>
    %c0_20 = arith.constant 0 : index
    %c0_21 = arith.constant 0 : index
    %c0_22 = arith.constant 0 : index
    %27 = vector.load %arg4[%c0_20, %c0_21, %c0_22] : memref<4x8x32xf32, #tpu.memory_space<vmem>>, vector<1x8x32xf32>
    %28 = vector.shape_cast %27 : vector<1x8x32xf32> to vector<8x32xf32>
    %cst_23 = arith.constant dense<0.000000e+00> : vector<16x32xf32>
    %29 = tpu.matmul %26, %28, %cst_23 {dimension_numbers = #tpu.dot_dimension_numbers<[1], [0], [0], [1], [0, 0, 1, 1], [], []>} : vector<16x8xf32>, vector<8x32xf32>, vector<16x32xf32> -> vector<16x32xf32>
    %30 = arith.addf %4, %29 : vector<16x32xf32>
    %c1 = arith.constant 1 : index
    %c0_24 = arith.constant 0 : index
    %c0_25 = arith.constant 0 : index
    %31 = vector.load %arg1[%c1, %c0_24, %c0_25] : memref<4x32x8xf32, #tpu.memory_space<vmem>>, vector<1x32x8xf32>
    %32 = vector.shape_cast %31 : vector<1x32x8xf32> to vector<32x8xf32>
    %cst_26 = arith.constant dense<0.000000e+00> : vector<16x8xf32>
    %33 = tpu.matmul %2, %32, %cst_26 {dimension_numbers = #tpu.dot_dimension_numbers<[1], [0], [0], [1], [0, 0, 1, 1], [], []>} : vector<16x32xf32>, vector<32x8xf32>, vector<16x8xf32> -> vector<16x8xf32>
    %c1_27 = arith.constant 1 : index
    %c0_28 = arith.constant 0 : index
    %c0_29 = arith.constant 0 : index
    %34 = vector.load %arg2[%c1_27, %c0_28, %c0_29] : memref<4x32x8xf32, #tpu.memory_space<vmem>>, vector<1x32x8xf32>
    %35 = vector.shape_cast %34 : vector<1x32x8xf32> to vector<32x8xf32>
    %cst_30 = arith.constant dense<0.000000e+00> : vector<16x8xf32>
    %36 = tpu.matmul %0, %35, %cst_30 {dimension_numbers = #tpu.dot_dimension_numbers<[1], [0], [0], [1], [0, 0, 1, 1], [], []>} : vector<16x32xf32>, vector<32x8xf32>, vector<16x8xf32> -> vector<16x8xf32>
    %c1_31 = arith.constant 1 : index
    %c0_32 = arith.constant 0 : index
    %c0_33 = arith.constant 0 : index
    %37 = vector.load %arg3[%c1_31, %c0_32, %c0_33] : memref<4x32x8xf32, #tpu.memory_space<vmem>>, vector<1x32x8xf32>
    %38 = vector.shape_cast %37 : vector<1x32x8xf32> to vector<32x8xf32>
    %cst_34 = arith.constant dense<0.000000e+00> : vector<16x8xf32>
    %39 = tpu.matmul %0, %38, %cst_34 {dimension_numbers = #tpu.dot_dimension_numbers<[1], [0], [0], [1], [0, 0, 1, 1], [], []>} : vector<16x32xf32>, vector<32x8xf32>, vector<16x8xf32> -> vector<16x8xf32>
    %cst_35 = arith.constant dense<0.000000e+00> : vector<16x16xf32>
    %40 = tpu.matmul %33, %36, %cst_35 {dimension_numbers = #tpu.dot_dimension_numbers<[1], [1], [0], [0], [0, 0, 1, 0], [], []>} : vector<16x8xf32>, vector<16x8xf32>, vector<16x16xf32> -> vector<16x16xf32>
    %41 = arith.addf %40, %3 : vector<16x16xf32>
    %cst_36 = arith.constant dense<0xFF800000> : vector<16xf32>
    %42 = vector.multi_reduction <maximumf>, %41, %cst_36 [1] : vector<16x16xf32> to vector<16xf32>
    %43 = vector.shape_cast %42 : vector<16xf32> to vector<16x1xf32>
    %44 = vector.broadcast %43 : vector<16x1xf32> to vector<16x16xf32>
    %45 = arith.subf %41, %44 : vector<16x16xf32>
    %46 = math.exp %45 : vector<16x16xf32>
    %cst_37 = arith.constant dense<0.000000e+00> : vector<16xf32>
    %47 = vector.multi_reduction <add>, %46, %cst_37 [1] : vector<16x16xf32> to vector<16xf32>
    %48 = vector.shape_cast %47 : vector<16xf32> to vector<16x1xf32>
    %49 = tpu.reciprocal %48 {approx = true} : vector<16x1xf32> -> vector<16x1xf32>
    %50 = vector.broadcast %49 : vector<16x1xf32> to vector<16x16xf32>
    %51 = arith.mulf %46, %50 : vector<16x16xf32>
    %cst_38 = arith.constant dense<0.000000e+00> : vector<16x8xf32>
    %52 = tpu.matmul %51, %39, %cst_38 {dimension_numbers = #tpu.dot_dimension_numbers<[1], [0], [0], [1], [0, 0, 1, 1], [], []>} : vector<16x16xf32>, vector<16x8xf32>, vector<16x8xf32> -> vector<16x8xf32>
    %c1_39 = arith.constant 1 : index
    %c0_40 = arith.constant 0 : index
    %c0_41 = arith.constant 0 : index
    %53 = vector.load %arg4[%c1_39, %c0_40, %c0_41] : memref<4x8x32xf32, #tpu.memory_space<vmem>>, vector<1x8x32xf32>
    %54 = vector.shape_cast %53 : vector<1x8x32xf32> to vector<8x32xf32>
    %cst_42 = arith.constant dense<0.000000e+00> : vector<16x32xf32>
    %55 = tpu.matmul %52, %54, %cst_42 {dimension_numbers = #tpu.dot_dimension_numbers<[1], [0], [0], [1], [0, 0, 1, 1], [], []>} : vector<16x8xf32>, vector<8x32xf32>, vector<16x32xf32> -> vector<16x32xf32>
    %56 = arith.addf %30, %55 : vector<16x32xf32>
    %c2 = arith.constant 2 : index
    %c0_43 = arith.constant 0 : index
    %c0_44 = arith.constant 0 : index
    %57 = vector.load %arg1[%c2, %c0_43, %c0_44] : memref<4x32x8xf32, #tpu.memory_space<vmem>>, vector<1x32x8xf32>
    %58 = vector.shape_cast %57 : vector<1x32x8xf32> to vector<32x8xf32>
    %cst_45 = arith.constant dense<0.000000e+00> : vector<16x8xf32>
    %59 = tpu.matmul %2, %58, %cst_45 {dimension_numbers = #tpu.dot_dimension_numbers<[1], [0], [0], [1], [0, 0, 1, 1], [], []>} : vector<16x32xf32>, vector<32x8xf32>, vector<16x8xf32> -> vector<16x8xf32>
    %c2_46 = arith.constant 2 : index
    %c0_47 = arith.constant 0 : index
    %c0_48 = arith.constant 0 : index
    %60 = vector.load %arg2[%c2_46, %c0_47, %c0_48] : memref<4x32x8xf32, #tpu.memory_space<vmem>>, vector<1x32x8xf32>
    %61 = vector.shape_cast %60 : vector<1x32x8xf32> to vector<32x8xf32>
    %cst_49 = arith.constant dense<0.000000e+00> : vector<16x8xf32>
    %62 = tpu.matmul %0, %61, %cst_49 {dimension_numbers = #tpu.dot_dimension_numbers<[1], [0], [0], [1], [0, 0, 1, 1], [], []>} : vector<16x32xf32>, vector<32x8xf32>, vector<16x8xf32> -> vector<16x8xf32>
    %c2_50 = arith.constant 2 : index
    %c0_51 = arith.constant 0 : index
    %c0_52 = arith.constant 0 : index
    %63 = vector.load %arg3[%c2_50, %c0_51, %c0_52] : memref<4x32x8xf32, #tpu.memory_space<vmem>>, vector<1x32x8xf32>
    %64 = vector.shape_cast %63 : vector<1x32x8xf32> to vector<32x8xf32>
    %cst_53 = arith.constant dense<0.000000e+00> : vector<16x8xf32>
    %65 = tpu.matmul %0, %64, %cst_53 {dimension_numbers = #tpu.dot_dimension_numbers<[1], [0], [0], [1], [0, 0, 1, 1], [], []>} : vector<16x32xf32>, vector<32x8xf32>, vector<16x8xf32> -> vector<16x8xf32>
    %cst_54 = arith.constant dense<0.000000e+00> : vector<16x16xf32>
    %66 = tpu.matmul %59, %62, %cst_54 {dimension_numbers = #tpu.dot_dimension_numbers<[1], [1], [0], [0], [0, 0, 1, 0], [], []>} : vector<16x8xf32>, vector<16x8xf32>, vector<16x16xf32> -> vector<16x16xf32>
    %67 = arith.addf %66, %3 : vector<16x16xf32>
    %cst_55 = arith.constant dense<0xFF800000> : vector<16xf32>
    %68 = vector.multi_reduction <maximumf>, %67, %cst_55 [1] : vector<16x16xf32> to vector<16xf32>
    %69 = vector.shape_cast %68 : vector<16xf32> to vector<16x1xf32>
    %70 = vector.broadcast %69 : vector<16x1xf32> to vector<16x16xf32>
    %71 = arith.subf %67, %70 : vector<16x16xf32>
    %72 = math.exp %71 : vector<16x16xf32>
    %cst_56 = arith.constant dense<0.000000e+00> : vector<16xf32>
    %73 = vector.multi_reduction <add>, %72, %cst_56 [1] : vector<16x16xf32> to vector<16xf32>
    %74 = vector.shape_cast %73 : vector<16xf32> to vector<16x1xf32>
    %75 = tpu.reciprocal %74 {approx = true} : vector<16x1xf32> -> vector<16x1xf32>
    %76 = vector.broadcast %75 : vector<16x1xf32> to vector<16x16xf32>
    %77 = arith.mulf %72, %76 : vector<16x16xf32>
    %cst_57 = arith.constant dense<0.000000e+00> : vector<16x8xf32>
    %78 = tpu.matmul %77, %65, %cst_57 {dimension_numbers = #tpu.dot_dimension_numbers<[1], [0], [0], [1], [0, 0, 1, 1], [], []>} : vector<16x16xf32>, vector<16x8xf32>, vector<16x8xf32> -> vector<16x8xf32>
    %c2_58 = arith.constant 2 : index
    %c0_59 = arith.constant 0 : index
    %c0_60 = arith.constant 0 : index
    %79 = vector.load %arg4[%c2_58, %c0_59, %c0_60] : memref<4x8x32xf32, #tpu.memory_space<vmem>>, vector<1x8x32xf32>
    %80 = vector.shape_cast %79 : vector<1x8x32xf32> to vector<8x32xf32>
    %cst_61 = arith.constant dense<0.000000e+00> : vector<16x32xf32>
    %81 = tpu.matmul %78, %80, %cst_61 {dimension_numbers = #tpu.dot_dimension_numbers<[1], [0], [0], [1], [0, 0, 1, 1], [], []>} : vector<16x8xf32>, vector<8x32xf32>, vector<16x32xf32> -> vector<16x32xf32>
    %82 = arith.addf %56, %81 : vector<16x32xf32>
    %c3 = arith.constant 3 : index
    %c0_62 = arith.constant 0 : index
    %c0_63 = arith.constant 0 : index
    %83 = vector.load %arg1[%c3, %c0_62, %c0_63] : memref<4x32x8xf32, #tpu.memory_space<vmem>>, vector<1x32x8xf32>
    %84 = vector.shape_cast %83 : vector<1x32x8xf32> to vector<32x8xf32>
    %cst_64 = arith.constant dense<0.000000e+00> : vector<16x8xf32>
    %85 = tpu.matmul %2, %84, %cst_64 {dimension_numbers = #tpu.dot_dimension_numbers<[1], [0], [0], [1], [0, 0, 1, 1], [], []>} : vector<16x32xf32>, vector<32x8xf32>, vector<16x8xf32> -> vector<16x8xf32>
    %c3_65 = arith.constant 3 : index
    %c0_66 = arith.constant 0 : index
    %c0_67 = arith.constant 0 : index
    %86 = vector.load %arg2[%c3_65, %c0_66, %c0_67] : memref<4x32x8xf32, #tpu.memory_space<vmem>>, vector<1x32x8xf32>
    %87 = vector.shape_cast %86 : vector<1x32x8xf32> to vector<32x8xf32>
    %cst_68 = arith.constant dense<0.000000e+00> : vector<16x8xf32>
    %88 = tpu.matmul %0, %87, %cst_68 {dimension_numbers = #tpu.dot_dimension_numbers<[1], [0], [0], [1], [0, 0, 1, 1], [], []>} : vector<16x32xf32>, vector<32x8xf32>, vector<16x8xf32> -> vector<16x8xf32>
    %c3_69 = arith.constant 3 : index
    %c0_70 = arith.constant 0 : index
    %c0_71 = arith.constant 0 : index
    %89 = vector.load %arg3[%c3_69, %c0_70, %c0_71] : memref<4x32x8xf32, #tpu.memory_space<vmem>>, vector<1x32x8xf32>
    %90 = vector.shape_cast %89 : vector<1x32x8xf32> to vector<32x8xf32>
    %cst_72 = arith.constant dense<0.000000e+00> : vector<16x8xf32>
    %91 = tpu.matmul %0, %90, %cst_72 {dimension_numbers = #tpu.dot_dimension_numbers<[1], [0], [0], [1], [0, 0, 1, 1], [], []>} : vector<16x32xf32>, vector<32x8xf32>, vector<16x8xf32> -> vector<16x8xf32>
    %cst_73 = arith.constant dense<0.000000e+00> : vector<16x16xf32>
    %92 = tpu.matmul %85, %88, %cst_73 {dimension_numbers = #tpu.dot_dimension_numbers<[1], [1], [0], [0], [0, 0, 1, 0], [], []>} : vector<16x8xf32>, vector<16x8xf32>, vector<16x16xf32> -> vector<16x16xf32>
    %93 = arith.addf %92, %3 : vector<16x16xf32>
    %cst_74 = arith.constant dense<0xFF800000> : vector<16xf32>
    %94 = vector.multi_reduction <maximumf>, %93, %cst_74 [1] : vector<16x16xf32> to vector<16xf32>
    %95 = vector.shape_cast %94 : vector<16xf32> to vector<16x1xf32>
    %96 = vector.broadcast %95 : vector<16x1xf32> to vector<16x16xf32>
    %97 = arith.subf %93, %96 : vector<16x16xf32>
    %98 = math.exp %97 : vector<16x16xf32>
    %cst_75 = arith.constant dense<0.000000e+00> : vector<16xf32>
    %99 = vector.multi_reduction <add>, %98, %cst_75 [1] : vector<16x16xf32> to vector<16xf32>
    %100 = vector.shape_cast %99 : vector<16xf32> to vector<16x1xf32>
    %101 = tpu.reciprocal %100 {approx = true} : vector<16x1xf32> -> vector<16x1xf32>
    %102 = vector.broadcast %101 : vector<16x1xf32> to vector<16x16xf32>
    %103 = arith.mulf %98, %102 : vector<16x16xf32>
    %cst_76 = arith.constant dense<0.000000e+00> : vector<16x8xf32>
    %104 = tpu.matmul %103, %91, %cst_76 {dimension_numbers = #tpu.dot_dimension_numbers<[1], [0], [0], [1], [0, 0, 1, 1], [], []>} : vector<16x16xf32>, vector<16x8xf32>, vector<16x8xf32> -> vector<16x8xf32>
    %c3_77 = arith.constant 3 : index
    %c0_78 = arith.constant 0 : index
    %c0_79 = arith.constant 0 : index
    %105 = vector.load %arg4[%c3_77, %c0_78, %c0_79] : memref<4x8x32xf32, #tpu.memory_space<vmem>>, vector<1x8x32xf32>
    %106 = vector.shape_cast %105 : vector<1x8x32xf32> to vector<8x32xf32>
    %cst_80 = arith.constant dense<0.000000e+00> : vector<16x32xf32>
    %107 = tpu.matmul %104, %106, %cst_80 {dimension_numbers = #tpu.dot_dimension_numbers<[1], [0], [0], [1], [0, 0, 1, 1], [], []>} : vector<16x8xf32>, vector<8x32xf32>, vector<16x32xf32> -> vector<16x32xf32>
    %108 = arith.addf %82, %107 : vector<16x32xf32>
    %c0_81 = arith.constant 0 : index
    %c0_82 = arith.constant 0 : index
    %109 = vector.load %arg5[%c0_81, %c0_82] : memref<1x32xf32, #tpu.memory_space<vmem>>, vector<1x32xf32>
    %110 = vector.broadcast %109 : vector<1x32xf32> to vector<16x32xf32>
    %111 = arith.addf %108, %110 : vector<16x32xf32>
    %c0_83 = arith.constant 0 : index
    %c0_84 = arith.constant 0 : index
    %112 = vector.load %arg7[%c0_83, %c0_84] : memref<16x32xf32, #tpu.memory_space<vmem>>, vector<16x32xf32>
    tpu.vector_store %arg7[%c0_83, %c0_84], %111 {strides = array<i32>} : memref<16x32xf32, #tpu.memory_space<vmem>>, vector<16x32xf32>,
    return
  }
}

</mosaic_0001>

<llo_original>
// kernel: tpu_custom_call.1
$region0: #{tpu_custom_call.1}
  #allocation0 [shape = 'u32[]', space=smem, size = 0x4, offset = 0x4, fixed_abs, tag = 'smem constant byte address 0x4 - core index']
  #allocation1 [shape = 'u32[144,128]{1,0:T(1,128)}', space=vmem, size = 0x12000, scoped, tag = 'internal scratch']
  %s0 = inlined_call_operand.vmem [shape: f32[16,32], index: 0, kind: input, shape index: {}]
  %s1 = inlined_call_operand.vmem [shape: f32[4,32,8], index: 1, kind: input, shape index: {}]
  %s2 = inlined_call_operand.vmem [shape: f32[4,32,8], index: 2, kind: input, shape index: {}]
  %s3 = inlined_call_operand.vmem [shape: f32[4,32,8], index: 3, kind: input, shape index: {}]
  %s4 = inlined_call_operand.vmem [shape: f32[4,8,32], index: 4, kind: input, shape index: {}]
  %s5 = inlined_call_operand.vmem [shape: f32[1,32], index: 5, kind: input, shape index: {}]
  %s6 = inlined_call_operand.vmem [shape: f32[16,16], index: 6, kind: input, shape index: {}]
  %s7 = inlined_call_operand.hbm [shape: f32[16,32], index: 7, kind: output, shape index: {}]
  %s8 = sld [smem:[#allocation0]]
  $region38: #{tpu_custom_call.1} parent=0
    _
  %s10 = ssub.s32 1, %s8
  %s11 = scalar_select 0, %s10, %s8
  $region1: #{tpu_custom_call.1} parent=0
    #allocation2 [shape = 'u8[8192]{0}', space=vmem, size = 0x2000, scoped, tag = 'output window, operand 0, single buffered']
    #allocation3 [shape = 's32[1]{0}', space=sflag, size = 0x4, scoped, tag = 'scoped memory for tpu_custom_call.1']
    %12 = vsyncpa [#allocation3], 0
    // Predicated region
    $region2: #{tpu_custom_call.1} parent=1 // pred_check
      _
    $region3: #{tpu_custom_call.1} parent=1 // pred_check_branch
      %14 = sbr.rel (0) target = $region5
    $region4: #{tpu_custom_call.1} parent=1 // pred_region
      _
    $region5: #{tpu_custom_call.1} parent=1 // pred_fallthru
      _
    // Predicated region
    $region6: #{tpu_custom_call.1} parent=1 // pred_check
      _
    $region7: #{tpu_custom_call.1} parent=1 // pred_check_branch
      %16 = sbr.rel (0) target = $region9
    $region8: #{tpu_custom_call.1} parent=1 // pred_region
      _
    $region9: #{tpu_custom_call.1} parent=1 // pred_fallthru
      _
    // Predicated region
    $region10: #{tpu_custom_call.1} parent=1 // pred_check
      _
    $region11: #{tpu_custom_call.1} parent=1 // pred_check_branch
      %18 = sbr.rel (0) target = $region13
    $region12: #{tpu_custom_call.1} parent=1 // pred_region
      _
    $region13: #{tpu_custom_call.1} parent=1 // pred_fallthru
      _
    // Predicated region
    $region14: #{tpu_custom_call.1} parent=1 // pred_check
      _
    $region15: #{tpu_custom_call.1} parent=1 // pred_check_branch
      %20 = sbr.rel (0) target = $region17
    $region16: #{tpu_custom_call.1} parent=1 // pred_region
      _
    $region17: #{tpu_custom_call.1} parent=1 // pred_fallthru
      _
    // Predicated region
    $region18: #{tpu_custom_call.1} parent=1 // pred_check
      _
    $region19: #{tpu_custom_call.1} parent=1 // pred_check_branch
      %22 = sbr.rel (0) target = $region21
    $region20: #{tpu_custom_call.1} parent=1 // pred_region
      _
    $region21: #{tpu_custom_call.1} parent=1 // pred_fallthru
      _
    // Predicated region
    $region22: #{tpu_custom_call.1} parent=1 // pred_check
      _
    $region23: #{tpu_custom_call.1} parent=1 // pred_check_branch
      %24 = sbr.rel (0) target = $region25
    $region24: #{tpu_custom_call.1} parent=1 // pred_region
      _
    $region25: #{tpu_custom_call.1} parent=1 // pred_fallthru
      _
    // Predicated region
    $region26: #{tpu_custom_call.1} parent=1 // pred_check
      _
    $region27: #{tpu_custom_call.1} parent=1 // pred_check_branch
      %26 = sbr.rel (0) target = $region29
    $region28: #{tpu_custom_call.1} parent=1 // pred_region
      _
    $region29: #{tpu_custom_call.1} parent=1 // pred_fallthru
      _
    %v27 = vld [vmem:[%s0] sm:$0xff]
    %v28 = vld [vmem:[%s0 + $0x8] sm:$0xff]
    %v29 = vmul.f32 %v27, 0.35355338
    %v30 = vmul.f32 %v28, 0.35355338
    %v31 = vld [vmem:[%s6] sm:$0xff]
    %v32 = vld [vmem:[%s6 + $0x8] sm:$0xff]
    %v33 = vld [vmem:[%s1] sm:$0xff]
    %v34 = vld [vmem:[%s1 + $0x8] sm:$0xff]
    %v35 = vld [vmem:[%s1 + $0x10] sm:$0xff]
    %v36 = vld [vmem:[%s1 + $0x18] sm:$0xff]
    %vm37 = vcmask 261120
    %v39 = vsel %vm37, %v29, 0
    %v42 = vsel %vm37, %v30, 0
    %44 = vmatprep.subr.mxu0 0.0
    %45 = vmatpush1.msra.mxu0 0.0
    %46 = vmatprep.subr.mxu0 0.0
    %47 = vmatpush1.msra.mxu0 0.0
    %48 = vmatprep.subr.mxu0 0.0
    %49 = vmatpush1.msra.mxu0 0.0
    %50 = vmatprep.subr.mxu0 0.0
    %51 = vmatpush1.msra.mxu0 0.0
    %52 = vmatprep.subr.mxu0 0.0
    %53 = vmatpush1.msra.mxu0 0.0
    %54 = vmatprep.subr.mxu0 0.0
    %55 = vmatpush1.msra.mxu0 0.0
    %56 = vmatprep.subr.mxu0 0.0
    %57 = vmatpush1.msra.mxu0 0.0
    %58 = vmatprep.subr.mxu0 0.0
    %59 = vmatpush1.msra.mxu0 0.0
    %60 = vmatprep.subr.mxu0 0.0
    %61 = vmatpush1.msra.mxu0 0.0
    %62 = vmatprep.subr.mxu0 0.0
    %63 = vmatpush1.msra.mxu0 0.0
    %64 = vmatprep.subr.mxu0 0.0
    %65 = vmatpush1.msra.mxu0 0.0
    %66 = vmatprep.subr.mxu0 0.0
    %67 = vmatpush1.msra.mxu0 0.0
    %68 = vmatprep.subr.mxu0 0.0
    %69 = vmatpush1.msra.mxu0 %v36
    %70 = vmatprep.subr.mxu0 0.0
    %71 = vmatpush1.msra.mxu0 %v35
    %72 = vmatprep.subr.mxu0 0.0
    %73 = vmatpush1.msra.mxu0 %v34
    %74 = vmatprep.subr.mxu0 0.0
    %75 = vmatpush1.msra.mxu0 %v33
    %76 = vmatprep.subr.mxu0 0.0
    %77 = vmatpush2.msra.mxu0 0.0
    %78 = vmatprep.subr.mxu0 0.0
    %79 = vmatpush2.msra.mxu0 0.0
    %80 = vmatprep.subr.mxu0 0.0
    %81 = vmatpush2.msra.mxu0 0.0
    %82 = vmatprep.subr.mxu0 0.0
    %83 = vmatpush2.msra.mxu0 0.0
    %84 = vmatprep.subr.mxu0 0.0
    %85 = vmatpush2.msra.mxu0 0.0
    %86 = vmatprep.subr.mxu0 0.0
    %87 = vmatpush2.msra.mxu0 0.0
    %88 = vmatprep.subr.mxu0 0.0
    %89 = vmatpush2.msra.mxu0 0.0
    %90 = vmatprep.subr.mxu0 0.0
    %91 = vmatpush2.msra.mxu0 0.0
    %92 = vmatprep.subr.mxu0 0.0
    %93 = vmatpush2.msra.mxu0 0.0
    %94 = vmatprep.subr.mxu0 0.0
    %95 = vmatpush2.msra.mxu0 0.0
    %96 = vmatprep.subr.mxu0 0.0
    %97 = vmatpush2.msra.mxu0 0.0
    %98 = vmatprep.subr.mxu0 0.0
    %99 = vmatpush2.msra.mxu0 0.0
    %100 = vmatprep.subr.mxu0 0.0
    %101 = vmatpush2.msra.mxu0 0.0
    %102 = vmatprep.subr.mxu0 0.0
    %103 = vmatpush2.msra.mxu0 0.0
    %104 = vmatprep.subr.mxu0 0.0
    %105 = vmatpush2.msra.mxu0 0.0
    %106 = vmatprep.subr.mxu0 0.0
    %107 = vmatpush2.msra.mxu0 0.0
    %108 = vmatprep.mubr.f32.mxu0 0.0
    %109 = vmatmul.mubr.f32.gmra.mxu0 %v39
    %v110 = vpop.f32.mrf.mxu0
    %v111 = vadd.f32 0.0, %v110
    %v112 = vpop.f32.mrf.mxu0
    %113 = vmatprep.mubr.f32.mxu0 0.0
    %114 = vmatmul.mubr.f32.gmra.mxu0 %v42
    %v115 = vpop.f32.mrf.mxu0
    %v116 = vadd.f32 0.0, %v115
    %v117 = vpop.f32.mrf.mxu0
    %118 = vdwg.mxu0
    %v119 = vld [vmem:[%s2] sm:$0xff]
    %v120 = vld [vmem:[%s2 + $0x8] sm:$0xff]
    %v121 = vld [vmem:[%s2 + $0x10] sm:$0xff]
    %v122 = vld [vmem:[%s2 + $0x18] sm:$0xff]
    %v124 = vsel %vm37, %v27, 0
    %v127 = vsel %vm37, %v28, 0
    %129 = vmatprep.subr.mxu0 0.0
    %130 = vmatpush1.msra.mxu0 0.0
    %131 = vmatprep.subr.mxu0 0.0
    %132 = vmatpush1.msra.mxu0 0.0
    %133 = vmatprep.subr.mxu0 0.0
    %134 = vmatpush1.msra.mxu0 0.0
    %135 = vmatprep.subr.mxu0 0.0
    %136 = vmatpush1.msra.mxu0 0.0
    %137 = vmatprep.subr.mxu0 0.0
    %138 = vmatpush1.msra.mxu0 0.0
    %139 = vmatprep.subr.mxu0 0.0
    %140 = vmatpush1.msra.mxu0 0.0
    %141 = vmatprep.subr.mxu0 0.0
    %142 = vmatpush1.msra.mxu0 0.0
    %143 = vmatprep.subr.mxu0 0.0
    %144 = vmatpush1.msra.mxu0 0.0
    %145 = vmatprep.subr.mxu0 0.0
    %146 = vmatpush1.msra.mxu0 0.0
    %147 = vmatprep.subr.mxu0 0.0
    %148 = vmatpush1.msra.mxu0 0.0
    %149 = vmatprep.subr.mxu0 0.0
    %150 = vmatpush1.msra.mxu0 0.0
    %151 = vmatprep.subr.mxu0 0.0
    %152 = vmatpush1.msra.mxu0 0.0
    %153 = vmatprep.subr.mxu0 0.0
    %154 = vmatpush1.msra.mxu0 %v122
    %155 = vmatprep.subr.mxu0 0.0
    %156 = vmatpush1.msra.mxu0 %v121
    %157 = vmatprep.subr.mxu0 0.0
    %158 = vmatpush1.msra.mxu0 %v120
    %159 = vmatprep.subr.mxu0 0.0
    %160 = vmatpush1.msra.mxu0 %v119
    %161 = vmatprep.subr.mxu0 0.0
    %162 = vmatpush2.msra.mxu0 0.0
    %163 = vmatprep.subr.mxu0 0.0
    %164 = vmatpush2.msra.mxu0 0.0
    %165 = vmatprep.subr.mxu0 0.0
    %166 = vmatpush2.msra.mxu0 0.0
    %167 = vmatprep.subr.mxu0 0.0
    %168 = vmatpush2.msra.mxu0 0.0
    %169 = vmatprep.subr.mxu0 0.0
    %170 = vmatpush2.msra.mxu0 0.0
    %171 = vmatprep.subr.mxu0 0.0
    %172 = vmatpush2.msra.mxu0 0.0
    %173 = vmatprep.subr.mxu0 0.0
    %174 = vmatpush2.msra.mxu0 0.0
    %175 = vmatprep.subr.mxu0 0.0
    %176 = vmatpush2.msra.mxu0 0.0
    %177 = vmatprep.subr.mxu0 0.0
    %178 = vmatpush2.msra.mxu0 0.0
    %179 = vmatprep.subr.mxu0 0.0
    %180 = vmatpush2.msra.mxu0 0.0
    %181 = vmatprep.subr.mxu0 0.0
    %182 = vmatpush2.msra.mxu0 0.0
    %183 = vmatprep.subr.mxu0 0.0
    %184 = vmatpush2.msra.mxu0 0.0
    %185 = vmatprep.subr.mxu0 0.0
    %186 = vmatpush2.msra.mxu0 0.0
    %187 = vmatprep.subr.mxu0 0.0
    %188 = vmatpush2.msra.mxu0 0.0
    %189 = vmatprep.subr.mxu0 0.0
    %190 = vmatpush2.msra.mxu0 0.0
    %191 = vmatprep.subr.mxu0 0.0
    %192 = vmatpush2.msra.mxu0 0.0
    %193 = vmatprep.mubr.f32.mxu0 0.0
    %194 = vmatmul.mubr.f32.gmra.mxu0 %v124
    %v195 = vpop.f32.mrf.mxu0
    %v196 = vadd.f32 0.0, %v195
    %v197 = vpop.f32.mrf.mxu0
    %198 = vmatprep.mubr.f32.mxu0 0.0
    %199 = vmatmul.mubr.f32.gmra.mxu0 %v127
    %v200 = vpop.f32.mrf.mxu0
    %v201 = vadd.f32 0.0, %v200
    %v202 = vpop.f32.mrf.mxu0
    %203 = vdwg.mxu0
    %v204 = vld [vmem:[%s3] sm:$0xff]
    %v205 = vld [vmem:[%s3 + $0x8] sm:$0xff]
    %v206 = vld [vmem:[%s3 + $0x10] sm:$0xff]
    %v207 = vld [vmem:[%s3 + $0x18] sm:$0xff]
    %208 = vmatprep.subr.mxu0 0.0
    %209 = vmatpush1.msra.mxu0 0.0
    %210 = vmatprep.subr.mxu0 0.0
    %211 = vmatpush1.msra.mxu0 0.0
    %212 = vmatprep.subr.mxu0 0.0
    %213 = vmatpush1.msra.mxu0 0.0
    %214 = vmatprep.subr.mxu0 0.0
    %215 = vmatpush1.msra.mxu0 0.0
    %216 = vmatprep.subr.mxu0 0.0
    %217 = vmatpush1.msra.mxu0 0.0
    %218 = vmatprep.subr.mxu0 0.0
    %219 = vmatpush1.msra.mxu0 0.0
    %220 = vmatprep.subr.mxu0 0.0
    %221 = vmatpush1.msra.mxu0 0.0
    %222 = vmatprep.subr.mxu0 0.0
    %223 = vmatpush1.msra.mxu0 0.0
    %224 = vmatprep.subr.mxu0 0.0
    %225 = vmatpush1.msra.mxu0 0.0
    %226 = vmatprep.subr.mxu0 0.0
    %227 = vmatpush1.msra.mxu0 0.0
    %228 = vmatprep.subr.mxu0 0.0
    %229 = vmatpush1.msra.mxu0 0.0
    %230 = vmatprep.subr.mxu0 0.0
    %231 = vmatpush1.msra.mxu0 0.0
    %232 = vmatprep.subr.mxu0 0.0
    %233 = vmatpush1.msra.mxu0 %v207
    %234 = vmatprep.subr.mxu0 0.0
    %235 = vmatpush1.msra.mxu0 %v206
    %236 = vmatprep.subr.mxu0 0.0
    %237 = vmatpush1.msra.mxu0 %v205
    %238 = vmatprep.subr.mxu0 0.0
    %239 = vmatpush1.msra.mxu0 %v204
    %240 = vmatprep.subr.mxu0 0.0
    %241 = vmatpush2.msra.mxu0 0.0
    %242 = vmatprep.subr.mxu0 0.0
    %243 = vmatpush2.msra.mxu0 0.0
    %244 = vmatprep.subr.mxu0 0.0
    %245 = vmatpush2.msra.mxu0 0.0
    %246 = vmatprep.subr.mxu0 0.0
    %247 = vmatpush2.msra.mxu0 0.0
    %248 = vmatprep.subr.mxu0 0.0
    %249 = vmatpush2.msra.mxu0 0.0
    %250 = vmatprep.subr.mxu0 0.0
    %251 = vmatpush2.msra.mxu0 0.0
    %252 = vmatprep.subr.mxu0 0.0
    %253 = vmatpush2.msra.mxu0 0.0
    %254 = vmatprep.subr.mxu0 0.0
    %255 = vmatpush2.msra.mxu0 0.0
    %256 = vmatprep.subr.mxu0 0.0
    %257 = vmatpush2.msra.mxu0 0.0
    %258 = vmatprep.subr.mxu0 0.0
    %259 = vmatpush2.msra.mxu0 0.0
    %260 = vmatprep.subr.mxu0 0.0
    %261 = vmatpush2.msra.mxu0 0.0
    %262 = vmatprep.subr.mxu0 0.0
    %263 = vmatpush2.msra.mxu0 0.0
    %264 = vmatprep.subr.mxu0 0.0
    %265 = vmatpush2.msra.mxu0 0.0
    %266 = vmatprep.subr.mxu0 0.0
    %267 = vmatpush2.msra.mxu0 0.0
    %268 = vmatprep.subr.mxu0 0.0
    %269 = vmatpush2.msra.mxu0 0.0
    %270 = vmatprep.subr.mxu0 0.0
    %271 = vmatpush2.msra.mxu0 0.0
    %272 = vmatprep.mubr.f32.mxu0 0.0
    %273 = vmatmul.mubr.f32.gmra.mxu0 %v124
    %v274 = vpop.f32.mrf.mxu0
    %v275 = vadd.f32 0.0, %v274
    %v276 = vpop.f32.mrf.mxu0
    %277 = vmatprep.mubr.f32.mxu0 0.0
    %278 = vmatmul.mubr.f32.gmra.mxu0 %v127
    %v279 = vpop.f32.mrf.mxu0
    %v280 = vadd.f32 0.0, %v279
    %v281 = vpop.f32.mrf.mxu0
    %282 = vdwg.mxu0
    %vm283 = vcmask 64512
    %v285 = vsel %vm283, %v111, 0
    %v288 = vsel %vm283, %v116, 0
    %v291 = vsel %vm283, %v196, 0
    %v294 = vsel %vm283, %v201, 0
    %296 = vmatprep.subr.mxu0 0.0
    %297 = vmatpush1.xpose.msra.mxu0 0.0
    %298 = vmatprep.subr.mxu0 0.0
    %299 = vmatpush1.xpose.msra.mxu0 0.0
    %300 = vmatprep.subr.mxu0 0.0
    %301 = vmatpush1.xpose.msra.mxu0 0.0
    %302 = vmatprep.subr.mxu0 0.0
    %303 = vmatpush1.xpose.msra.mxu0 0.0
    %304 = vmatprep.subr.mxu0 0.0
    %305 = vmatpush1.xpose.msra.mxu0 0.0
    %306 = vmatprep.subr.mxu0 0.0
    %307 = vmatpush1.xpose.msra.mxu0 0.0
    %308 = vmatprep.subr.mxu0 0.0
    %309 = vmatpush1.xpose.msra.mxu0 0.0
    %310 = vmatprep.subr.mxu0 0.0
    %311 = vmatpush1.xpose.msra.mxu0 0.0
    %312 = vmatprep.subr.mxu0 0.0
    %313 = vmatpush1.xpose.msra.mxu0 0.0
    %314 = vmatprep.subr.mxu0 0.0
    %315 = vmatpush1.xpose.msra.mxu0 0.0
    %316 = vmatprep.subr.mxu0 0.0
    %317 = vmatpush1.xpose.msra.mxu0 0.0
    %318 = vmatprep.subr.mxu0 0.0
    %319 = vmatpush1.xpose.msra.mxu0 0.0
    %320 = vmatprep.subr.mxu0 0.0
    %321 = vmatpush1.xpose.msra.mxu0 0.0
    %322 = vmatprep.subr.mxu0 0.0
    %323 = vmatpush1.xpose.msra.mxu0 0.0
    %324 = vmatprep.subr.mxu0 0.0
    %325 = vmatpush1.xpose.msra.mxu0 %v294
    %326 = vmatprep.subr.mxu0 0.0
    %327 = vmatpush1.xpose.msra.mxu0 %v291
    %328 = vmatprep.subr.mxu0 0.0
    %329 = vmatpush2.xpose.msra.mxu0 0.0
    %330 = vmatprep.subr.mxu0 0.0
    %331 = vmatpush2.xpose.msra.mxu0 0.0
    %332 = vmatprep.subr.mxu0 0.0
    %333 = vmatpush2.xpose.msra.mxu0 0.0
    %334 = vmatprep.subr.mxu0 0.0
    %335 = vmatpush2.xpose.msra.mxu0 0.0
    %336 = vmatprep.subr.mxu0 0.0
    %337 = vmatpush2.xpose.msra.mxu0 0.0
    %338 = vmatprep.subr.mxu0 0.0
    %339 = vmatpush2.xpose.msra.mxu0 0.0
    %340 = vmatprep.subr.mxu0 0.0
    %341 = vmatpush2.xpose.msra.mxu0 0.0
    %342 = vmatprep.subr.mxu0 0.0
    %343 = vmatpush2.xpose.msra.mxu0 0.0
    %344 = vmatprep.subr.mxu0 0.0
    %345 = vmatpush2.xpose.msra.mxu0 0.0
    %346 = vmatprep.subr.mxu0 0.0
    %347 = vmatpush2.xpose.msra.mxu0 0.0
    %348 = vmatprep.subr.mxu0 0.0
    %349 = vmatpush2.xpose.msra.mxu0 0.0
    %350 = vmatprep.subr.mxu0 0.0
    %351 = vmatpush2.xpose.msra.mxu0 0.0
    %352 = vmatprep.subr.mxu0 0.0
    %353 = vmatpush2.xpose.msra.mxu0 0.0
    %354 = vmatprep.subr.mxu0 0.0
    %355 = vmatpush2.xpose.msra.mxu0 0.0
    %356 = vmatprep.subr.mxu0 0.0
    %357 = vmatpush2.xpose.msra.mxu0 0.0
    %358 = vmatprep.subr.mxu0 0.0
    %359 = vmatpush2.xpose.msra.mxu0 0.0
    %360 = vmatprep.mubr.f32.mxu0 0.0
    %361 = vmatmul.mubr.f32.gmra.mxu0 %v285
    %v362 = vpop.f32.mrf.mxu0
    %v363 = vadd.f32 %v31, %v362
    %v364 = vpop.f32.mrf.mxu0
    %365 = vmatprep.mubr.f32.mxu0 0.0
    %366 = vmatmul.mubr.f32.gmra.mxu0 %v288
    %v367 = vpop.f32.mrf.mxu0
    %v368 = vadd.f32 %v32, %v367
    %v369 = vpop.f32.mrf.mxu0
    %370 = vdwg.mxu0
    %vm371 = vcmask 130048
    %v372 = vsel %vm371, %v363, -inf
    %373 = vmax.xlane.f32.xlu0 %v372
    %v374 = vpop.xlane.xlu0 %373
    %v375 = vsel %vm371, %v368, -inf
    %376 = vmax.xlane.f32.xlu0 %v375
    %v377 = vpop.xlane.xlu0 %376
    %v378 = vsub.f32 %v363, %v374
    %v379 = vsub.f32 %v368, %v377
    %v380 = vmul.f32 %v378, 1.442695
    %v381 = vpow.pop %v380
    %v382 = vmul.f32 %v379, 1.442695
    %v383 = vpow.pop %v382
    %v384 = vsel %vm371, %v381, 0.0
    %385 = vadd.xlane.f32.xlu0 %v384
    %v386 = vpop.xlane.xlu0 %385
    %v387 = vsel %vm371, %v383, 0.0
    %388 = vadd.xlane.f32.xlu0 %v387
    %v389 = vpop.xlane.xlu0 %388
    %v390 = vrcp.pop %v386
    %v391 = vrcp.pop %v389
    %v392 = vmul.f32 %v381, %v390
    %v393 = vmul.f32 %v383, %v391
    %v395 = vsel %vm371, %v392, 0
    %v398 = vsel %vm371, %v393, 0
    %400 = vmatprep.subr.mxu0 0.0
    %401 = vmatpush1.msra.mxu0 0.0
    %402 = vmatprep.subr.mxu0 0.0
    %403 = vmatpush1.msra.mxu0 0.0
    %404 = vmatprep.subr.mxu0 0.0
    %405 = vmatpush1.msra.mxu0 0.0
    %406 = vmatprep.subr.mxu0 0.0
    %407 = vmatpush1.msra.mxu0 0.0
    %408 = vmatprep.subr.mxu0 0.0
    %409 = vmatpush1.msra.mxu0 0.0
    %410 = vmatprep.subr.mxu0 0.0
    %411 = vmatpush1.msra.mxu0 0.0
    %412 = vmatprep.subr.mxu0 0.0
    %413 = vmatpush1.msra.mxu0 0.0
    %414 = vmatprep.subr.mxu0 0.0
    %415 = vmatpush1.msra.mxu0 0.0
    %416 = vmatprep.subr.mxu0 0.0
    %417 = vmatpush1.msra.mxu0 0.0
    %418 = vmatprep.subr.mxu0 0.0
    %419 = vmatpush1.msra.mxu0 0.0
    %420 = vmatprep.subr.mxu0 0.0
    %421 = vmatpush1.msra.mxu0 0.0
    %422 = vmatprep.subr.mxu0 0.0
    %423 = vmatpush1.msra.mxu0 0.0
    %424 = vmatprep.subr.mxu0 0.0
    %425 = vmatpush1.msra.mxu0 0.0
    %426 = vmatprep.subr.mxu0 0.0
    %427 = vmatpush1.msra.mxu0 0.0
    %428 = vmatprep.subr.mxu0 0.0
    %429 = vmatpush1.msra.mxu0 %v280
    %430 = vmatprep.subr.mxu0 0.0
    %431 = vmatpush1.msra.mxu0 %v275
    %432 = vmatprep.subr.mxu0 0.0
    %433 = vmatpush2.msra.mxu0 0.0
    %434 = vmatprep.subr.mxu0 0.0
    %435 = vmatpush2.msra.mxu0 0.0
    %436 = vmatprep.subr.mxu0 0.0
    %437 = vmatpush2.msra.mxu0 0.0
    %438 = vmatprep.subr.mxu0 0.0
    %439 = vmatpush2.msra.mxu0 0.0
    %440 = vmatprep.subr.mxu0 0.0
    %441 = vmatpush2.msra.mxu0 0.0
    %442 = vmatprep.subr.mxu0 0.0
    %443 = vmatpush2.msra.mxu0 0.0
    %444 = vmatprep.subr.mxu0 0.0
    %445 = vmatpush2.msra.mxu0 0.0
    %446 = vmatprep.subr.mxu0 0.0
    %447 = vmatpush2.msra.mxu0 0.0
    %448 = vmatprep.subr.mxu0 0.0
    %449 = vmatpush2.msra.mxu0 0.0
    %450 = vmatprep.subr.mxu0 0.0
    %451 = vmatpush2.msra.mxu0 0.0
    %452 = vmatprep.subr.mxu0 0.0
    %453 = vmatpush2.msra.mxu0 0.0
    %454 = vmatprep.subr.mxu0 0.0
    %455 = vmatpush2.msra.mxu0 0.0
    %456 = vmatprep.subr.mxu0 0.0
    %457 = vmatpush2.msra.mxu0 0.0
    %458 = vmatprep.subr.mxu0 0.0
    %459 = vmatpush2.msra.mxu0 0.0
    %460 = vmatprep.subr.mxu0 0.0
    %461 = vmatpush2.msra.mxu0 0.0
    %462 = vmatprep.subr.mxu0 0.0
    %463 = vmatpush2.msra.mxu0 0.0
    %464 = vmatprep.mubr.f32.mxu0 0.0
    %465 = vmatmul.mubr.f32.gmra.mxu0 %v395
    %v466 = vpop.f32.mrf.mxu0
    %v467 = vadd.f32 0.0, %v466
    %v468 = vpop.f32.mrf.mxu0
    %469 = vmatprep.mubr.f32.mxu0 0.0
    %470 = vmatmul.mubr.f32.gmra.mxu0 %v398
    %v471 = vpop.f32.mrf.mxu0
    %v472 = vadd.f32 0.0, %v471
    %v473 = vpop.f32.mrf.mxu0
    %474 = vdwg.mxu0
    %v475 = vld [vmem:[%s4] sm:$0xff]
    %s476 = scalar_lea.vmem %s1, 32
    %v477 = vld [vmem:[%s476] sm:$0xff]
    %v478 = vld [vmem:[%s476 + $0x8] sm:$0xff]
    %v479 = vld [vmem:[%s476 + $0x10] sm:$0xff]
    %v480 = vld [vmem:[%s476 + $0x18] sm:$0xff]
    %481 = vmatprep.subr.mxu0 0.0
    %482 = vmatpush1.msra.mxu0 0.0
    %483 = vmatprep.subr.mxu0 0.0
    %484 = vmatpush1.msra.mxu0 0.0
    %485 = vmatprep.subr.mxu0 0.0
    %486 = vmatpush1.msra.mxu0 0.0
    %487 = vmatprep.subr.mxu0 0.0
    %488 = vmatpush1.msra.mxu0 0.0
    %489 = vmatprep.subr.mxu0 0.0
    %490 = vmatpush1.msra.mxu0 0.0
    %491 = vmatprep.subr.mxu0 0.0
    %492 = vmatpush1.msra.mxu0 0.0
    %493 = vmatprep.subr.mxu0 0.0
    %494 = vmatpush1.msra.mxu0 0.0
    %495 = vmatprep.subr.mxu0 0.0
    %496 = vmatpush1.msra.mxu0 0.0
    %497 = vmatprep.subr.mxu0 0.0
    %498 = vmatpush1.msra.mxu0 0.0
    %499 = vmatprep.subr.mxu0 0.0
    %500 = vmatpush1.msra.mxu0 0.0
    %501 = vmatprep.subr.mxu0 0.0
    %502 = vmatpush1.msra.mxu0 0.0
    %503 = vmatprep.subr.mxu0 0.0
    %504 = vmatpush1.msra.mxu0 0.0
    %505 = vmatprep.subr.mxu0 0.0
    %506 = vmatpush1.msra.mxu0 %v480
    %507 = vmatprep.subr.mxu0 0.0
    %508 = vmatpush1.msra.mxu0 %v479
    %509 = vmatprep.subr.mxu0 0.0
    %510 = vmatpush1.msra.mxu0 %v478
    %511 = vmatprep.subr.mxu0 0.0
    %512 = vmatpush1.msra.mxu0 %v477
    %513 = vmatprep.subr.mxu0 0.0
    %514 = vmatpush2.msra.mxu0 0.0
    %515 = vmatprep.subr.mxu0 0.0
    %516 = vmatpush2.msra.mxu0 0.0
    %517 = vmatprep.subr.mxu0 0.0
    %518 = vmatpush2.msra.mxu0 0.0
    %519 = vmatprep.subr.mxu0 0.0
    %520 = vmatpush2.msra.mxu0 0.0
    %521 = vmatprep.subr.mxu0 0.0
    %522 = vmatpush2.msra.mxu0 0.0
    %523 = vmatprep.subr.mxu0 0.0
    %524 = vmatpush2.msra.mxu0 0.0
    %525 = vmatprep.subr.mxu0 0.0
    %526 = vmatpush2.msra.mxu0 0.0
    %527 = vmatprep.subr.mxu0 0.0
    %528 = vmatpush2.msra.mxu0 0.0
    %529 = vmatprep.subr.mxu0 0.0
    %530 = vmatpush2.msra.mxu0 0.0
    %531 = vmatprep.subr.mxu0 0.0
    %532 = vmatpush2.msra.mxu0 0.0
    %533 = vmatprep.subr.mxu0 0.0
    %534 = vmatpush2.msra.mxu0 0.0
    %535 = vmatprep.subr.mxu0 0.0
    %536 = vmatpush2.msra.mxu0 0.0
    %537 = vmatprep.subr.mxu0 0.0
    %538 = vmatpush2.msra.mxu0 0.0
    %539 = vmatprep.subr.mxu0 0.0
    %540 = vmatpush2.msra.mxu0 0.0
    %541 = vmatprep.subr.mxu0 0.0
    %542 = vmatpush2.msra.mxu0 0.0
    %543 = vmatprep.subr.mxu0 0.0
    %544 = vmatpush2.msra.mxu0 0.0
    %545 = vmatprep.mubr.f32.mxu0 0.0
    %546 = vmatmul.mubr.f32.gmra.mxu0 %v39
    %v547 = vpop.f32.mrf.mxu0
    %v548 = vadd.f32 0.0, %v547
    %v549 = vpop.f32.mrf.mxu0
    %550 = vmatprep.mubr.f32.mxu0 0.0
    %551 = vmatmul.mubr.f32.gmra.mxu0 %v42
    %v552 = vpop.f32.mrf.mxu0
    %v553 = vadd.f32 0.0, %v552
    %v554 = vpop.f32.mrf.mxu0
    %555 = vdwg.mxu0
    %s556 = scalar_lea.vmem %s2, 32
    %v557 = vld [vmem:[%s556] sm:$0xff]
    %v558 = vld [vmem:[%s556 + $0x8] sm:$0xff]
    %v559 = vld [vmem:[%s556 + $0x10] sm:$0xff]
    %v560 = vld [vmem:[%s556 + $0x18] sm:$0xff]
    %561 = vmatprep.subr.mxu0 0.0
    %562 = vmatpush1.msra.mxu0 0.0
    %563 = vmatprep.subr.mxu0 0.0
    %564 = vmatpush1.msra.mxu0 0.0
    %565 = vmatprep.subr.mxu0 0.0
    %566 = vmatpush1.msra.mxu0 0.0
    %567 = vmatprep.subr.mxu0 0.0
    %568 = vmatpush1.msra.mxu0 0.0
    %569 = vmatprep.subr.mxu0 0.0
    %570 = vmatpush1.msra.mxu0 0.0
    %571 = vmatprep.subr.mxu0 0.0
    %572 = vmatpush1.msra.mxu0 0.0
    %573 = vmatprep.subr.mxu0 0.0
    %574 = vmatpush1.msra.mxu0 0.0
    %575 = vmatprep.subr.mxu0 0.0
    %576 = vmatpush1.msra.mxu0 0.0
    %577 = vmatprep.subr.mxu0 0.0
    %578 = vmatpush1.msra.mxu0 0.0
    %579 = vmatprep.subr.mxu0 0.0
    %580 = vmatpush1.msra.mxu0 0.0
    %581 = vmatprep.subr.mxu0 0.0
    %582 = vmatpush1.msra.mxu0 0.0
    %583 = vmatprep.subr.mxu0 0.0
    %584 = vmatpush1.msra.mxu0 0.0
    %585 = vmatprep.subr.mxu0 0.0
    %586 = vmatpush1.msra.mxu0 %v560
    %587 = vmatprep.subr.mxu0 0.0
    %588 = vmatpush1.msra.mxu0 %v559
    %589 = vmatprep.subr.mxu0 0.0
    %590 = vmatpush1.msra.mxu0 %v558
    %591 = vmatprep.subr.mxu0 0.0
    %592 = vmatpush1.msra.mxu0 %v557
    %593 = vmatprep.subr.mxu0 0.0
    %594 = vmatpush2.msra.mxu0 0.0
    %595 = vmatprep.subr.mxu0 0.0
    %596 = vmatpush2.msra.mxu0 0.0
    %597 = vmatprep.subr.mxu0 0.0
    %598 = vmatpush2.msra.mxu0 0.0
    %599 = vmatprep.subr.mxu0 0.0
    %600 = vmatpush2.msra.mxu0 0.0
    %601 = vmatprep.subr.mxu0 0.0
    %602 = vmatpush2.msra.mxu0 0.0
    %603 = vmatprep.subr.mxu0 0.0
    %604 = vmatpush2.msra.mxu0 0.0
    %605 = vmatprep.subr.mxu0 0.0
    %606 = vmatpush2.msra.mxu0 0.0
    %607 = vmatprep.subr.mxu0 0.0
    %608 = vmatpush2.msra.mxu0 0.0
    %609 = vmatprep.subr.mxu0 0.0
    %610 = vmatpush2.msra.mxu0 0.0
    %611 = vmatprep.subr.mxu0 0.0
    %612 = vmatpush2.msra.mxu0 0.0
    %613 = vmatprep.subr.mxu0 0.0
    %614 = vmatpush2.msra.mxu0 0.0
    %615 = vmatprep.subr.mxu0 0.0
    %616 = vmatpush2.msra.mxu0 0.0
    %617 = vmatprep.subr.mxu0 0.0
    %618 = vmatpush2.msra.mxu0 0.0
    %619 = vmatprep.subr.mxu0 0.0
    %620 = vmatpush2.msra.mxu0 0.0
    %621 = vmatprep.subr.mxu0 0.0
    %622 = vmatpush2.msra.mxu0 0.0
    %623 = vmatprep.subr.mxu0 0.0
    %624 = vmatpush2.msra.mxu0 0.0
    %625 = vmatprep.mubr.f32.mxu0 0.0
    %626 = vmatmul.mubr.f32.gmra.mxu0 %v124
    %v627 = vpop.f32.mrf.mxu0
    %v628 = vadd.f32 0.0, %v627
    %v629 = vpop.f32.mrf.mxu0
    %630 = vmatprep.mubr.f32.mxu0 0.0
    %631 = vmatmul.mubr.f32.gmra.mxu0 %v127
    %v632 = vpop.f32.mrf.mxu0
    %v633 = vadd.f32 0.0, %v632
    %v634 = vpop.f32.mrf.mxu0
    %635 = vdwg.mxu0
    %s636 = scalar_lea.vmem %s3, 32
    %v637 = vld [vmem:[%s636] sm:$0xff]
    %v638 = vld [vmem:[%s636 + $0x8] sm:$0xff]
    %v639 = vld [vmem:[%s636 + $0x10] sm:$0xff]
    %v640 = vld [vmem:[%s636 + $0x18] sm:$0xff]
    %641 = vmatprep.subr.mxu0 0.0
    %642 = vmatpush1.msra.mxu0 0.0
    %643 = vmatprep.subr.mxu0 0.0
    %644 = vmatpush1.msra.mxu0 0.0
    %645 = vmatprep.subr.mxu0 0.0
    %646 = vmatpush1.msra.mxu0 0.0
    %647 = vmatprep.subr.mxu0 0.0
    %648 = vmatpush1.msra.mxu0 0.0
    %649 = vmatprep.subr.mxu0 0.0
    %650 = vmatpush1.msra.mxu0 0.0
    %651 = vmatprep.subr.mxu0 0.0
    %652 = vmatpush1.msra.mxu0 0.0
    %653 = vmatprep.subr.mxu0 0.0
    %654 = vmatpush1.msra.mxu0 0.0
    %655 = vmatprep.subr.mxu0 0.0
    %656 = vmatpush1.msra.mxu0 0.0
    %657 = vmatprep.subr.mxu0 0.0
    %658 = vmatpush1.msra.mxu0 0.0
    %659 = vmatprep.subr.mxu0 0.0
    %660 = vmatpush1.msra.mxu0 0.0
    %661 = vmatprep.subr.mxu0 0.0
    %662 = vmatpush1.msra.mxu0 0.0
    %663 = vmatprep.subr.mxu0 0.0
    %664 = vmatpush1.msra.mxu0 0.0
    %665 = vmatprep.subr.mxu0 0.0
    %666 = vmatpush1.msra.mxu0 %v640
    %667 = vmatprep.subr.mxu0 0.0
    %668 = vmatpush1.msra.mxu0 %v639
    %669 = vmatprep.subr.mxu0 0.0
    %670 = vmatpush1.msra.mxu0 %v638
    %671 = vmatprep.subr.mxu0 0.0
    %672 = vmatpush1.msra.mxu0 %v637
    %673 = vmatprep.subr.mxu0 0.0
    %674 = vmatpush2.msra.mxu0 0.0
    %675 = vmatprep.subr.mxu0 0.0
    %676 = vmatpush2.msra.mxu0 0.0
    %677 = vmatprep.subr.mxu0 0.0
    %678 = vmatpush2.msra.mxu0 0.0
    %679 = vmatprep.subr.mxu0 0.0
    %680 = vmatpush2.msra.mxu0 0.0
    %681 = vmatprep.subr.mxu0 0.0
    %682 = vmatpush2.msra.mxu0 0.0
    %683 = vmatprep.subr.mxu0 0.0
    %684 = vmatpush2.msra.mxu0 0.0
    %685 = vmatprep.subr.mxu0 0.0
    %686 = vmatpush2.msra.mxu0 0.0
    %687 = vmatprep.subr.mxu0 0.0
    %688 = vmatpush2.msra.mxu0 0.0
    %689 = vmatprep.subr.mxu0 0.0
    %690 = vmatpush2.msra.mxu0 0.0
    %691 = vmatprep.subr.mxu0 0.0
    %692 = vmatpush2.msra.mxu0 0.0
    %693 = vmatprep.subr.mxu0 0.0
    %694 = vmatpush2.msra.mxu0 0.0
    %695 = vmatprep.subr.mxu0 0.0
    %696 = vmatpush2.msra.mxu0 0.0
    %697 = vmatprep.subr.mxu0 0.0
    %698 = vmatpush2.msra.mxu0 0.0
    %699 = vmatprep.subr.mxu0 0.0
    %700 = vmatpush2.msra.mxu0 0.0
    %701 = vmatprep.subr.mxu0 0.0
    %702 = vmatpush2.msra.mxu0 0.0
    %703 = vmatprep.subr.mxu0 0.0
    %704 = vmatpush2.msra.mxu0 0.0
    %705 = vmatprep.mubr.f32.mxu0 0.0
    %706 = vmatmul.mubr.f32.gmra.mxu0 %v124
    %v707 = vpop.f32.mrf.mxu0
    %v708 = vadd.f32 0.0, %v707
    %v709 = vpop.f32.mrf.mxu0
    %710 = vmatprep.mubr.f32.mxu0 0.0
    %711 = vmatmul.mubr.f32.gmra.mxu0 %v127
    %v712 = vpop.f32.mrf.mxu0
    %v713 = vadd.f32 0.0, %v712
    %v714 = vpop.f32.mrf.mxu0
    %715 = vdwg.mxu0
    %v717 = vsel %vm283, %v548, 0
    %v720 = vsel %vm283, %v553, 0
    %v723 = vsel %vm283, %v628, 0
    %v726 = vsel %vm283, %v633, 0
    %728 = vmatprep.subr.mxu0 0.0
    %729 = vmatpush1.xpose.msra.mxu0 0.0
    %730 = vmatprep.subr.mxu0 0.0
    %731 = vmatpush1.xpose.msra.mxu0 0.0
    %732 = vmatprep.subr.mxu0 0.0
    %733 = vmatpush1.xpose.msra.mxu0 0.0
    %734 = vmatprep.subr.mxu0 0.0
    %735 = vmatpush1.xpose.msra.mxu0 0.0
    %736 = vmatprep.subr.mxu0 0.0
    %737 = vmatpush1.xpose.msra.mxu0 0.0
    %738 = vmatprep.subr.mxu0 0.0
    %739 = vmatpush1.xpose.msra.mxu0 0.0
    %740 = vmatprep.subr.mxu0 0.0
    %741 = vmatpush1.xpose.msra.mxu0 0.0
    %742 = vmatprep.subr.mxu0 0.0
    %743 = vmatpush1.xpose.msra.mxu0 0.0
    %744 = vmatprep.subr.mxu0 0.0
    %745 = vmatpush1.xpose.msra.mxu0 0.0
    %746 = vmatprep.subr.mxu0 0.0
    %747 = vmatpush1.xpose.msra.mxu0 0.0
    %748 = vmatprep.subr.mxu0 0.0
    %749 = vmatpush1.xpose.msra.mxu0 0.0
    %750 = vmatprep.subr.mxu0 0.0
    %751 = vmatpush1.xpose.msra.mxu0 0.0
    %752 = vmatprep.subr.mxu0 0.0
    %753 = vmatpush1.xpose.msra.mxu0 0.0
    %754 = vmatprep.subr.mxu0 0.0
    %755 = vmatpush1.xpose.msra.mxu0 0.0
    %756 = vmatprep.subr.mxu0 0.0
    %757 = vmatpush1.xpose.msra.mxu0 %v726
    %758 = vmatprep.subr.mxu0 0.0
    %759 = vmatpush1.xpose.msra.mxu0 %v723
    %760 = vmatprep.subr.mxu0 0.0
    %761 = vmatpush2.xpose.msra.mxu0 0.0
    %762 = vmatprep.subr.mxu0 0.0
    %763 = vmatpush2.xpose.msra.mxu0 0.0
    %764 = vmatprep.subr.mxu0 0.0
    %765 = vmatpush2.xpose.msra.mxu0 0.0
    %766 = vmatprep.subr.mxu0 0.0
    %767 = vmatpush2.xpose.msra.mxu0 0.0
    %768 = vmatprep.subr.mxu0 0.0
    %769 = vmatpush2.xpose.msra.mxu0 0.0
    %770 = vmatprep.subr.mxu0 0.0
    %771 = vmatpush2.xpose.msra.mxu0 0.0
    %772 = vmatprep.subr.mxu0 0.0
    %773 = vmatpush2.xpose.msra.mxu0 0.0
    %774 = vmatprep.subr.mxu0 0.0
    %775 = vmatpush2.xpose.msra.mxu0 0.0
    %776 = vmatprep.subr.mxu0 0.0
    %777 = vmatpush2.xpose.msra.mxu0 0.0
    %778 = vmatprep.subr.mxu0 0.0
    %779 = vmatpush2.xpose.msra.mxu0 0.0
    %780 = vmatprep.subr.mxu0 0.0
    %781 = vmatpush2.xpose.msra.mxu0 0.0
    %782 = vmatprep.subr.mxu0 0.0
    %783 = vmatpush2.xpose.msra.mxu0 0.0
    %784 = vmatprep.subr.mxu0 0.0
    %785 = vmatpush2.xpose.msra.mxu0 0.0
    %786 = vmatprep.subr.mxu0 0.0
    %787 = vmatpush2.xpose.msra.mxu0 0.0
    %788 = vmatprep.subr.mxu0 0.0
    %789 = vmatpush2.xpose.msra.mxu0 0.0
    %790 = vmatprep.subr.mxu0 0.0
    %791 = vmatpush2.xpose.msra.mxu0 0.0
    %792 = vmatprep.mubr.f32.mxu0 0.0
    %793 = vmatmul.mubr.f32.gmra.mxu0 %v717
    %v794 = vpop.f32.mrf.mxu0
    %v795 = vadd.f32 %v31, %v794
    %v796 = vpop.f32.mrf.mxu0
    %797 = vmatprep.mubr.f32.mxu0 0.0
    %798 = vmatmul.mubr.f32.gmra.mxu0 %v720
    %v799 = vpop.f32.mrf.mxu0
    %v800 = vadd.f32 %v32, %v799
    %v801 = vpop.f32.mrf.mxu0
    %802 = vdwg.mxu0
    %v803 = vsel %vm371, %v795, -inf
    %804 = vmax.xlane.f32.xlu0 %v803
    %v805 = vpop.xlane.xlu0 %804
    %v806 = vsel %vm371, %v800, -inf
    %807 = vmax.xlane.f32.xlu0 %v806
    %v808 = vpop.xlane.xlu0 %807
    %v809 = vsub.f32 %v795, %v805
    %v810 = vsub.f32 %v800, %v808
    %v811 = vmul.f32 %v809, 1.442695
    %v812 = vpow.pop %v811
    %v813 = vmul.f32 %v810, 1.442695
    %v814 = vpow.pop %v813
    %v815 = vsel %vm371, %v812, 0.0
    %816 = vadd.xlane.f32.xlu0 %v815
    %v817 = vpop.xlane.xlu0 %816
    %v818 = vsel %vm371, %v814, 0.0
    %819 = vadd.xlane.f32.xlu0 %v818
    %v820 = vpop.xlane.xlu0 %819
    %v821 = vrcp.pop %v817
    %v822 = vrcp.pop %v820
    %v823 = vmul.f32 %v812, %v821
    %v824 = vmul.f32 %v814, %v822
    %v826 = vsel %vm371, %v823, 0
    %v829 = vsel %vm371, %v824, 0
    %831 = vmatprep.subr.mxu0 0.0
    %832 = vmatpush1.msra.mxu0 0.0
    %833 = vmatprep.subr.mxu0 0.0
    %834 = vmatpush1.msra.mxu0 0.0
    %835 = vmatprep.subr.mxu0 0.0
    %836 = vmatpush1.msra.mxu0 0.0
    %837 = vmatprep.subr.mxu0 0.0
    %838 = vmatpush1.msra.mxu0 0.0
    %839 = vmatprep.subr.mxu0 0.0
    %840 = vmatpush1.msra.mxu0 0.0
    %841 = vmatprep.subr.mxu0 0.0
    %842 = vmatpush1.msra.mxu0 0.0
    %843 = vmatprep.subr.mxu0 0.0
    %844 = vmatpush1.msra.mxu0 0.0
    %845 = vmatprep.subr.mxu0 0.0
    %846 = vmatpush1.msra.mxu0 0.0
    %847 = vmatprep.subr.mxu0 0.0
    %848 = vmatpush1.msra.mxu0 0.0
    %849 = vmatprep.subr.mxu0 0.0
    %850 = vmatpush1.msra.mxu0 0.0
    %851 = vmatprep.subr.mxu0 0.0
    %852 = vmatpush1.msra.mxu0 0.0
    %853 = vmatprep.subr.mxu0 0.0
    %854 = vmatpush1.msra.mxu0 0.0
    %855 = vmatprep.subr.mxu0 0.0
    %856 = vmatpush1.msra.mxu0 0.0
    %857 = vmatprep.subr.mxu0 0.0
    %858 = vmatpush1.msra.mxu0 0.0
    %859 = vmatprep.subr.mxu0 0.0
    %860 = vmatpush1.msra.mxu0 %v713
    %861 = vmatprep.subr.mxu0 0.0
    %862 = vmatpush1.msra.mxu0 %v708
    %863 = vmatprep.subr.mxu0 0.0
    %864 = vmatpush2.msra.mxu0 0.0
    %865 = vmatprep.subr.mxu0 0.0
    %866 = vmatpush2.msra.mxu0 0.0
    %867 = vmatprep.subr.mxu0 0.0
    %868 = vmatpush2.msra.mxu0 0.0
    %869 = vmatprep.subr.mxu0 0.0
    %870 = vmatpush2.msra.mxu0 0.0
    %871 = vmatprep.subr.mxu0 0.0
    %872 = vmatpush2.msra.mxu0 0.0
    %873 = vmatprep.subr.mxu0 0.0
    %874 = vmatpush2.msra.mxu0 0.0
    %875 = vmatprep.subr.mxu0 0.0
    %876 = vmatpush2.msra.mxu0 0.0
    %877 = vmatprep.subr.mxu0 0.0
    %878 = vmatpush2.msra.mxu0 0.0
    %879 = vmatprep.subr.mxu0 0.0
    %880 = vmatpush2.msra.mxu0 0.0
    %881 = vmatprep.subr.mxu0 0.0
    %882 = vmatpush2.msra.mxu0 0.0
    %883 = vmatprep.subr.mxu0 0.0
    %884 = vmatpush2.msra.mxu0 0.0
    %885 = vmatprep.subr.mxu0 0.0
    %886 = vmatpush2.msra.mxu0 0.0
    %887 = vmatprep.subr.mxu0 0.0
    %888 = vmatpush2.msra.mxu0 0.0
    %889 = vmatprep.subr.mxu0 0.0
    %890 = vmatpush2.msra.mxu0 0.0
    %891 = vmatprep.subr.mxu0 0.0
    %892 = vmatpush2.msra.mxu0 0.0
    %893 = vmatprep.subr.mxu0 0.0
    %894 = vmatpush2.msra.mxu0 0.0
    %895 = vmatprep.mubr.f32.mxu0 0.0
    %896 = vmatmul.mubr.f32.gmra.mxu0 %v826
    %v897 = vpop.f32.mrf.mxu0
    %v898 = vadd.f32 0.0, %v897
    %v899 = vpop.f32.mrf.mxu0
    %900 = vmatprep.mubr.f32.mxu0 0.0
    %901 = vmatmul.mubr.f32.gmra.mxu0 %v829
    %v902 = vpop.f32.mrf.mxu0
    %v903 = vadd.f32 0.0, %v902
    %v904 = vpop.f32.mrf.mxu0
    %905 = vdwg.mxu0
    %s906 = scalar_lea.vmem %s4, 8
    %v907 = vld [vmem:[%s906] sm:$0xff]
    %v909 = vsel %vm283, %v898, 0
    %v912 = vsel %vm283, %v903, 0
    %914 = vmatprep.subr.mxu0 0.0
    %915 = vmatpush1.msra.mxu0 0.0
    %916 = vmatprep.subr.mxu0 0.0
    %917 = vmatpush1.msra.mxu0 0.0
    %918 = vmatprep.subr.mxu0 0.0
    %919 = vmatpush1.msra.mxu0 0.0
    %920 = vmatprep.subr.mxu0 0.0
    %921 = vmatpush1.msra.mxu0 0.0
    %922 = vmatprep.subr.mxu0 0.0
    %923 = vmatpush1.msra.mxu0 0.0
    %924 = vmatprep.subr.mxu0 0.0
    %925 = vmatpush1.msra.mxu0 0.0
    %926 = vmatprep.subr.mxu0 0.0
    %927 = vmatpush1.msra.mxu0 0.0
    %928 = vmatprep.subr.mxu0 0.0
    %929 = vmatpush1.msra.mxu0 0.0
    %930 = vmatprep.subr.mxu0 0.0
    %931 = vmatpush1.msra.mxu0 0.0
    %932 = vmatprep.subr.mxu0 0.0
    %933 = vmatpush1.msra.mxu0 0.0
    %934 = vmatprep.subr.mxu0 0.0
    %935 = vmatpush1.msra.mxu0 0.0
    %936 = vmatprep.subr.mxu0 0.0
    %937 = vmatpush1.msra.mxu0 0.0
    %938 = vmatprep.subr.mxu0 0.0
    %939 = vmatpush1.msra.mxu0 0.0
    %940 = vmatprep.subr.mxu0 0.0
    %941 = vmatpush1.msra.mxu0 0.0
    %942 = vmatprep.subr.mxu0 0.0
    %943 = vmatpush1.msra.mxu0 0.0
    %944 = vmatprep.subr.mxu0 0.0
    %945 = vmatpush1.msra.mxu0 %v907
    %946 = vmatprep.subr.mxu0 0.0
    %947 = vmatpush2.msra.mxu0 0.0
    %948 = vmatprep.subr.mxu0 0.0
    %949 = vmatpush2.msra.mxu0 0.0
    %950 = vmatprep.subr.mxu0 0.0
    %951 = vmatpush2.msra.mxu0 0.0
    %952 = vmatprep.subr.mxu0 0.0
    %953 = vmatpush2.msra.mxu0 0.0
    %954 = vmatprep.subr.mxu0 0.0
    %955 = vmatpush2.msra.mxu0 0.0
    %956 = vmatprep.subr.mxu0 0.0
    %957 = vmatpush2.msra.mxu0 0.0
    %958 = vmatprep.subr.mxu0 0.0
    %959 = vmatpush2.msra.mxu0 0.0
    %960 = vmatprep.subr.mxu0 0.0
    %961 = vmatpush2.msra.mxu0 0.0
    %962 = vmatprep.subr.mxu0 0.0
    %963 = vmatpush2.msra.mxu0 0.0
    %964 = vmatprep.subr.mxu0 0.0
    %965 = vmatpush2.msra.mxu0 0.0
    %966 = vmatprep.subr.mxu0 0.0
    %967 = vmatpush2.msra.mxu0 0.0
    %968 = vmatprep.subr.mxu0 0.0
    %969 = vmatpush2.msra.mxu0 0.0
    %970 = vmatprep.subr.mxu0 0.0
    %971 = vmatpush2.msra.mxu0 0.0
    %972 = vmatprep.subr.mxu0 0.0
    %973 = vmatpush2.msra.mxu0 0.0
    %974 = vmatprep.subr.mxu0 0.0
    %975 = vmatpush2.msra.mxu0 0.0
    %976 = vmatprep.subr.mxu0 0.0
    %977 = vmatpush2.msra.mxu0 0.0
    %978 = vmatprep.mubr.f32.mxu0 0.0
    %979 = vmatmul.mubr.f32.gmra.mxu0 %v909
    %v980 = vpop.f32.mrf.mxu0
    %v981 = vadd.f32 0.0, %v980
    %v982 = vpop.f32.mrf.mxu0
    %983 = vmatprep.mubr.f32.mxu0 0.0
    %984 = vmatmul.mubr.f32.gmra.mxu0 %v912
    %v985 = vpop.f32.mrf.mxu0
    %v986 = vadd.f32 0.0, %v985
    %v987 = vpop.f32.mrf.mxu0
    %988 = vdwg.mxu0
    %v990 = vsel %vm283, %v467, 0
    %v993 = vsel %vm283, %v472, 0
    %995 = vmatprep.subr.mxu0 0.0
    %996 = vmatpush1.msra.mxu0 0.0
    %997 = vmatprep.subr.mxu0 0.0
    %998 = vmatpush1.msra.mxu0 0.0
    %999 = vmatprep.subr.mxu0 0.0
    %1000 = vmatpush1.msra.mxu0 0.0
    %1001 = vmatprep.subr.mxu0 0.0
    %1002 = vmatpush1.msra.mxu0 0.0
    %1003 = vmatprep.subr.mxu0 0.0
    %1004 = vmatpush1.msra.mxu0 0.0
    %1005 = vmatprep.subr.mxu0 0.0
    %1006 = vmatpush1.msra.mxu0 0.0
    %1007 = vmatprep.subr.mxu0 0.0
    %1008 = vmatpush1.msra.mxu0 0.0
    %1009 = vmatprep.subr.mxu0 0.0
    %1010 = vmatpush1.msra.mxu0 0.0
    %1011 = vmatprep.subr.mxu0 0.0
    %1012 = vmatpush1.msra.mxu0 0.0
    %1013 = vmatprep.subr.mxu0 0.0
    %1014 = vmatpush1.msra.mxu0 0.0
    %1015 = vmatprep.subr.mxu0 0.0
    %1016 = vmatpush1.msra.mxu0 0.0
    %1017 = vmatprep.subr.mxu0 0.0
    %1018 = vmatpush1.msra.mxu0 0.0
    %1019 = vmatprep.subr.mxu0 0.0
    %1020 = vmatpush1.msra.mxu0 0.0
    %1021 = vmatprep.subr.mxu0 0.0
    %1022 = vmatpush1.msra.mxu0 0.0
    %1023 = vmatprep.subr.mxu0 0.0
    %1024 = vmatpush1.msra.mxu0 0.0
    %1025 = vmatprep.subr.mxu0 0.0
    %1026 = vmatpush1.msra.mxu0 %v475
    %1027 = vmatprep.subr.mxu0 0.0
    %1028 = vmatpush2.msra.mxu0 0.0
    %1029 = vmatprep.subr.mxu0 0.0
    %1030 = vmatpush2.msra.mxu0 0.0
    %1031 = vmatprep.subr.mxu0 0.0
    %1032 = vmatpush2.msra.mxu0 0.0
    %1033 = vmatprep.subr.mxu0 0.0
    %1034 = vmatpush2.msra.mxu0 0.0
    %1035 = vmatprep.subr.mxu0 0.0
    %1036 = vmatpush2.msra.mxu0 0.0
    %1037 = vmatprep.subr.mxu0 0.0
    %1038 = vmatpush2.msra.mxu0 0.0
    %1039 = vmatprep.subr.mxu0 0.0
    %1040 = vmatpush2.msra.mxu0 0.0
    %1041 = vmatprep.subr.mxu0 0.0
    %1042 = vmatpush2.msra.mxu0 0.0
    %1043 = vmatprep.subr.mxu0 0.0
    %1044 = vmatpush2.msra.mxu0 0.0
    %1045 = vmatprep.subr.mxu0 0.0
    %1046 = vmatpush2.msra.mxu0 0.0
    %1047 = vmatprep.subr.mxu0 0.0
    %1048 = vmatpush2.msra.mxu0 0.0
    %1049 = vmatprep.subr.mxu0 0.0
    %1050 = vmatpush2.msra.mxu0 0.0
    %1051 = vmatprep.subr.mxu0 0.0
    %1052 = vmatpush2.msra.mxu0 0.0
    %1053 = vmatprep.subr.mxu0 0.0
    %1054 = vmatpush2.msra.mxu0 0.0
    %1055 = vmatprep.subr.mxu0 0.0
    %1056 = vmatpush2.msra.mxu0 0.0
    %1057 = vmatprep.subr.mxu0 0.0
    %1058 = vmatpush2.msra.mxu0 0.0
    %1059 = vmatprep.mubr.f32.mxu0 0.0
    %1060 = vmatmul.mubr.f32.gmra.mxu0 %v990
    %v1061 = vpop.f32.mrf.mxu0
    %v1062 = vadd.f32 %v981, %v1061
    %v1063 = vpop.f32.mrf.mxu0
    %1064 = vmatprep.mubr.f32.mxu0 0.0
    %1065 = vmatmul.mubr.f32.gmra.mxu0 %v993
    %v1066 = vpop.f32.mrf.mxu0
    %v1067 = vadd.f32 %v986, %v1066
    %v1068 = vpop.f32.mrf.mxu0
    %1069 = vdwg.mxu0
    %s1070 = scalar_lea.vmem %s1, 64
    %v1071 = vld [vmem:[%s1070] sm:$0xff]
    %v1072 = vld [vmem:[%s1070 + $0x8] sm:$0xff]
    %v1073 = vld [vmem:[%s1070 + $0x10] sm:$0xff]
    %v1074 = vld [vmem:[%s1070 + $0x18] sm:$0xff]
    %1075 = vmatprep.subr.mxu0 0.0
    %1076 = vmatpush1.msra.mxu0 0.0
    %1077 = vmatprep.subr.mxu0 0.0
    %1078 = vmatpush1.msra.mxu0 0.0
    %1079 = vmatprep.subr.mxu0 0.0
    %1080 = vmatpush1.msra.mxu0 0.0
    %1081 = vmatprep.subr.mxu0 0.0
    %1082 = vmatpush1.msra.mxu0 0.0
    %1083 = vmatprep.subr.mxu0 0.0
    %1084 = vmatpush1.msra.mxu0 0.0
    %1085 = vmatprep.subr.mxu0 0.0
    %1086 = vmatpush1.msra.mxu0 0.0
    %1087 = vmatprep.subr.mxu0 0.0
    %1088 = vmatpush1.msra.mxu0 0.0
    %1089 = vmatprep.subr.mxu0 0.0
    %1090 = vmatpush1.msra.mxu0 0.0
    %1091 = vmatprep.subr.mxu0 0.0
    %1092 = vmatpush1.msra.mxu0 0.0
    %1093 = vmatprep.subr.mxu0 0.0
    %1094 = vmatpush1.msra.mxu0 0.0
    %1095 = vmatprep.subr.mxu0 0.0
    %1096 = vmatpush1.msra.mxu0 0.0
    %1097 = vmatprep.subr.mxu0 0.0
    %1098 = vmatpush1.msra.mxu0 0.0
    %1099 = vmatprep.subr.mxu0 0.0
    %1100 = vmatpush1.msra.mxu0 %v1074
    %1101 = vmatprep.subr.mxu0 0.0
    %1102 = vmatpush1.msra.mxu0 %v1073
    %1103 = vmatprep.subr.mxu0 0.0
    %1104 = vmatpush1.msra.mxu0 %v1072
    %1105 = vmatprep.subr.mxu0 0.0
    %1106 = vmatpush1.msra.mxu0 %v1071
    %1107 = vmatprep.subr.mxu0 0.0
    %1108 = vmatpush2.msra.mxu0 0.0
    %1109 = vmatprep.subr.mxu0 0.0
    %1110 = vmatpush2.msra.mxu0 0.0
    %1111 = vmatprep.subr.mxu0 0.0
    %1112 = vmatpush2.msra.mxu0 0.0
    %1113 = vmatprep.subr.mxu0 0.0
    %1114 = vmatpush2.msra.mxu0 0.0
    %1115 = vmatprep.subr.mxu0 0.0
    %1116 = vmatpush2.msra.mxu0 0.0
    %1117 = vmatprep.subr.mxu0 0.0
    %1118 = vmatpush2.msra.mxu0 0.0
    %1119 = vmatprep.subr.mxu0 0.0
    %1120 = vmatpush2.msra.mxu0 0.0
    %1121 = vmatprep.subr.mxu0 0.0
    %1122 = vmatpush2.msra.mxu0 0.0
    %1123 = vmatprep.subr.mxu0 0.0
    %1124 = vmatpush2.msra.mxu0 0.0
    %1125 = vmatprep.subr.mxu0 0.0
    %1126 = vmatpush2.msra.mxu0 0.0
    %1127 = vmatprep.subr.mxu0 0.0
    %1128 = vmatpush2.msra.mxu0 0.0
    %1129 = vmatprep.subr.mxu0 0.0
    %1130 = vmatpush2.msra.mxu0 0.0
    %1131 = vmatprep.subr.mxu0 0.0
    %1132 = vmatpush2.msra.mxu0 0.0
    %1133 = vmatprep.subr.mxu0 0.0
    %1134 = vmatpush2.msra.mxu0 0.0
    %1135 = vmatprep.subr.mxu0 0.0
    %1136 = vmatpush2.msra.mxu0 0.0
    %1137 = vmatprep.subr.mxu0 0.0
    %1138 = vmatpush2.msra.mxu0 0.0
    %1139 = vmatprep.mubr.f32.mxu0 0.0
    %1140 = vmatmul.mubr.f32.gmra.mxu0 %v39
    %v1141 = vpop.f32.mrf.mxu0
    %v1142 = vadd.f32 0.0, %v1141
    %v1143 = vpop.f32.mrf.mxu0
    %1144 = vmatprep.mubr.f32.mxu0 0.0
    %1145 = vmatmul.mubr.f32.gmra.mxu0 %v42
    %v1146 = vpop.f32.mrf.mxu0
    %v1147 = vadd.f32 0.0, %v1146
    %v1148 = vpop.f32.mrf.mxu0
    %1149 = vdwg.mxu0
    %s1150 = scalar_lea.vmem %s2, 64
    %v1151 = vld [vmem:[%s1150] sm:$0xff]
    %v1152 = vld [vmem:[%s1150 + $0x8] sm:$0xff]
    %v1153 = vld [vmem:[%s1150 + $0x10] sm:$0xff]
    %v1154 = vld [vmem:[%s1150 + $0x18] sm:$0xff]
    %1155 = vmatprep.subr.mxu0 0.0
    %1156 = vmatpush1.msra.mxu0 0.0
    %1157 = vmatprep.subr.mxu0 0.0
    %1158 = vmatpush1.msra.mxu0 0.0
    %1159 = vmatprep.subr.mxu0 0.0
    %1160 = vmatpush1.msra.mxu0 0.0
    %1161 = vmatprep.subr.mxu0 0.0
    %1162 = vmatpush1.msra.mxu0 0.0
    %1163 = vmatprep.subr.mxu0 0.0
    %1164 = vmatpush1.msra.mxu0 0.0
    %1165 = vmatprep.subr.mxu0 0.0
    %1166 = vmatpush1.msra.mxu0 0.0
    %1167 = vmatprep.subr.mxu0 0.0
    %1168 = vmatpush1.msra.mxu0 0.0
    %1169 = vmatprep.subr.mxu0 0.0
    %1170 = vmatpush1.msra.mxu0 0.0
    %1171 = vmatprep.subr.mxu0 0.0
    %1172 = vmatpush1.msra.mxu0 0.0
    %1173 = vmatprep.subr.mxu0 0.0
    %1174 = vmatpush1.msra.mxu0 0.0
    %1175 = vmatprep.subr.mxu0 0.0
    %1176 = vmatpush1.msra.mxu0 0.0
    %1177 = vmatprep.subr.mxu0 0.0
    %1178 = vmatpush1.msra.mxu0 0.0
    %1179 = vmatprep.subr.mxu0 0.0
    %1180 = vmatpush1.msra.mxu0 %v1154
    %1181 = vmatprep.subr.mxu0 0.0
    %1182 = vmatpush1.msra.mxu0 %v1153
    %1183 = vmatprep.subr.mxu0 0.0
    %1184 = vmatpush1.msra.mxu0 %v1152
    %1185 = vmatprep.subr.mxu0 0.0
    %1186 = vmatpush1.msra.mxu0 %v1151
    %1187 = vmatprep.subr.mxu0 0.0
    %1188 = vmatpush2.msra.mxu0 0.0
    %1189 = vmatprep.subr.mxu0 0.0
    %1190 = vmatpush2.msra.mxu0 0.0
    %1191 = vmatprep.subr.mxu0 0.0
    %1192 = vmatpush2.msra.mxu0 0.0
    %1193 = vmatprep.subr.mxu0 0.0
    %1194 = vmatpush2.msra.mxu0 0.0
    %1195 = vmatprep.subr.mxu0 0.0
    %1196 = vmatpush2.msra.mxu0 0.0
    %1197 = vmatprep.subr.mxu0 0.0
    %1198 = vmatpush2.msra.mxu0 0.0
    %1199 = vmatprep.subr.mxu0 0.0
    %1200 = vmatpush2.msra.mxu0 0.0
    %1201 = vmatprep.subr.mxu0 0.0
    %1202 = vmatpush2.msra.mxu0 0.0
    %1203 = vmatprep.subr.mxu0 0.0
    %1204 = vmatpush2.msra.mxu0 0.0
    %1205 = vmatprep.subr.mxu0 0.0
    %1206 = vmatpush2.msra.mxu0 0.0
    %1207 = vmatprep.subr.mxu0 0.0
    %1208 = vmatpush2.msra.mxu0 0.0
    %1209 = vmatprep.subr.mxu0 0.0
    %1210 = vmatpush2.msra.mxu0 0.0
    %1211 = vmatprep.subr.mxu0 0.0
    %1212 = vmatpush2.msra.mxu0 0.0
    %1213 = vmatprep.subr.mxu0 0.0
    %1214 = vmatpush2.msra.mxu0 0.0
    %1215 = vmatprep.subr.mxu0 0.0
    %1216 = vmatpush2.msra.mxu0 0.0
    %1217 = vmatprep.subr.mxu0 0.0
    %1218 = vmatpush2.msra.mxu0 0.0
    %1219 = vmatprep.mubr.f32.mxu0 0.0
    %1220 = vmatmul.mubr.f32.gmra.mxu0 %v124
    %v1221 = vpop.f32.mrf.mxu0
    %v1222 = vadd.f32 0.0, %v1221
    %v1223 = vpop.f32.mrf.mxu0
    %1224 = vmatprep.mubr.f32.mxu0 0.0
    %1225 = vmatmul.mubr.f32.gmra.mxu0 %v127
    %v1226 = vpop.f32.mrf.mxu0
    %v1227 = vadd.f32 0.0, %v1226
    %v1228 = vpop.f32.mrf.mxu0
    %1229 = vdwg.mxu0
    %s1230 = scalar_lea.vmem %s3, 64
    %v1231 = vld [vmem:[%s1230] sm:$0xff]
    %v1232 = vld [vmem:[%s1230 + $0x8] sm:$0xff]
    %v1233 = vld [vmem:[%s1230 + $0x10] sm:$0xff]
    %v1234 = vld [vmem:[%s1230 + $0x18] sm:$0xff]
    %1235 = vmatprep.subr.mxu0 0.0
    %1236 = vmatpush1.msra.mxu0 0.0
    %1237 = vmatprep.subr.mxu0 0.0
    %1238 = vmatpush1.msra.mxu0 0.0
    %1239 = vmatprep.subr.mxu0 0.0
    %1240 = vmatpush1.msra.mxu0 0.0
    %1241 = vmatprep.subr.mxu0 0.0
    %1242 = vmatpush1.msra.mxu0 0.0
    %1243 = vmatprep.subr.mxu0 0.0
    %1244 = vmatpush1.msra.mxu0 0.0
    %1245 = vmatprep.subr.mxu0 0.0
    %1246 = vmatpush1.msra.mxu0 0.0
    %1247 = vmatprep.subr.mxu0 0.0
    %1248 = vmatpush1.msra.mxu0 0.0
    %1249 = vmatprep.subr.mxu0 0.0
    %1250 = vmatpush1.msra.mxu0 0.0
    %1251 = vmatprep.subr.mxu0 0.0
    %1252 = vmatpush1.msra.mxu0 0.0
    %1253 = vmatprep.subr.mxu0 0.0
    %1254 = vmatpush1.msra.mxu0 0.0
    %1255 = vmatprep.subr.mxu0 0.0
    %1256 = vmatpush1.msra.mxu0 0.0
    %1257 = vmatprep.subr.mxu0 0.0
    %1258 = vmatpush1.msra.mxu0 0.0
    %1259 = vmatprep.subr.mxu0 0.0
    %1260 = vmatpush1.msra.mxu0 %v1234
    %1261 = vmatprep.subr.mxu0 0.0
    %1262 = vmatpush1.msra.mxu0 %v1233
    %1263 = vmatprep.subr.mxu0 0.0
    %1264 = vmatpush1.msra.mxu0 %v1232
    %1265 = vmatprep.subr.mxu0 0.0
    %1266 = vmatpush1.msra.mxu0 %v1231
    %1267 = vmatprep.subr.mxu0 0.0
    %1268 = vmatpush2.msra.mxu0 0.0
    %1269 = vmatprep.subr.mxu0 0.0
    %1270 = vmatpush2.msra.mxu0 0.0
    %1271 = vmatprep.subr.mxu0 0.0
    %1272 = vmatpush2.msra.mxu0 0.0
    %1273 = vmatprep.subr.mxu0 0.0
    %1274 = vmatpush2.msra.mxu0 0.0
    %1275 = vmatprep.subr.mxu0 0.0
    %1276 = vmatpush2.msra.mxu0 0.0
    %1277 = vmatprep.subr.mxu0 0.0
    %1278 = vmatpush2.msra.mxu0 0.0
    %1279 = vmatprep.subr.mxu0 0.0
    %1280 = vmatpush2.msra.mxu0 0.0
    %1281 = vmatprep.subr.mxu0 0.0
    %1282 = vmatpush2.msra.mxu0 0.0
    %1283 = vmatprep.subr.mxu0 0.0
    %1284 = vmatpush2.msra.mxu0 0.0
    %1285 = vmatprep.subr.mxu0 0.0
    %1286 = vmatpush2.msra.mxu0 0.0
    %1287 = vmatprep.subr.mxu0 0.0
    %1288 = vmatpush2.msra.mxu0 0.0
    %1289 = vmatprep.subr.mxu0 0.0
    %1290 = vmatpush2.msra.mxu0 0.0
    %1291 = vmatprep.subr.mxu0 0.0
    %1292 = vmatpush2.msra.mxu0 0.0
    %1293 = vmatprep.subr.mxu0 0.0
    %1294 = vmatpush2.msra.mxu0 0.0
    %1295 = vmatprep.subr.mxu0 0.0
    %1296 = vmatpush2.msra.mxu0 0.0
    %1297 = vmatprep.subr.mxu0 0.0
    %1298 = vmatpush2.msra.mxu0 0.0
    %1299 = vmatprep.mubr.f32.mxu0 0.0
    %1300 = vmatmul.mubr.f32.gmra.mxu0 %v124
    %v1301 = vpop.f32.mrf.mxu0
    %v1302 = vadd.f32 0.0, %v1301
    %v1303 = vpop.f32.mrf.mxu0
    %1304 = vmatprep.mubr.f32.mxu0 0.0
    %1305 = vmatmul.mubr.f32.gmra.mxu0 %v127
    %v1306 = vpop.f32.mrf.mxu0
    %v1307 = vadd.f32 0.0, %v1306
    %v1308 = vpop.f32.mrf.mxu0
    %1309 = vdwg.mxu0
    %v1311 = vsel %vm283, %v1142, 0
    %v1314 = vsel %vm283, %v1147, 0
    %v1317 = vsel %vm283, %v1222, 0
    %v1320 = vsel %vm283, %v1227, 0
    %1322 = vmatprep.subr.mxu0 0.0
    %1323 = vmatpush1.xpose.msra.mxu0 0.0
    %1324 = vmatprep.subr.mxu0 0.0
    %1325 = vmatpush1.xpose.msra.mxu0 0.0
    %1326 = vmatprep.subr.mxu0 0.0
    %1327 = vmatpush1.xpose.msra.mxu0 0.0
    %1328 = vmatprep.subr.mxu0 0.0
    %1329 = vmatpush1.xpose.msra.mxu0 0.0
    %1330 = vmatprep.subr.mxu0 0.0
    %1331 = vmatpush1.xpose.msra.mxu0 0.0
    %1332 = vmatprep.subr.mxu0 0.0
    %1333 = vmatpush1.xpose.msra.mxu0 0.0
    %1334 = vmatprep.subr.mxu0 0.0
    %1335 = vmatpush1.xpose.msra.mxu0 0.0
    %1336 = vmatprep.subr.mxu0 0.0
    %1337 = vmatpush1.xpose.msra.mxu0 0.0
    %1338 = vmatprep.subr.mxu0 0.0
    %1339 = vmatpush1.xpose.msra.mxu0 0.0
    %1340 = vmatprep.subr.mxu0 0.0
    %1341 = vmatpush1.xpose.msra.mxu0 0.0
    %1342 = vmatprep.subr.mxu0 0.0
    %1343 = vmatpush1.xpose.msra.mxu0 0.0
    %1344 = vmatprep.subr.mxu0 0.0
    %1345 = vmatpush1.xpose.msra.mxu0 0.0
    %1346 = vmatprep.subr.mxu0 0.0
    %1347 = vmatpush1.xpose.msra.mxu0 0.0
    %1348 = vmatprep.subr.mxu0 0.0
    %1349 = vmatpush1.xpose.msra.mxu0 0.0
    %1350 = vmatprep.subr.mxu0 0.0
    %1351 = vmatpush1.xpose.msra.mxu0 %v1320
    %1352 = vmatprep.subr.mxu0 0.0
    %1353 = vmatpush1.xpose.msra.mxu0 %v1317
    %1354 = vmatprep.subr.mxu0 0.0
    %1355 = vmatpush2.xpose.msra.mxu0 0.0
    %1356 = vmatprep.subr.mxu0 0.0
    %1357 = vmatpush2.xpose.msra.mxu0 0.0
    %1358 = vmatprep.subr.mxu0 0.0
    %1359 = vmatpush2.xpose.msra.mxu0 0.0
    %1360 = vmatprep.subr.mxu0 0.0
    %1361 = vmatpush2.xpose.msra.mxu0 0.0
    %1362 = vmatprep.subr.mxu0 0.0
    %1363 = vmatpush2.xpose.msra.mxu0 0.0
    %1364 = vmatprep.subr.mxu0 0.0
    %1365 = vmatpush2.xpose.msra.mxu0 0.0
    %1366 = vmatprep.subr.mxu0 0.0
    %1367 = vmatpush2.xpose.msra.mxu0 0.0
    %1368 = vmatprep.subr.mxu0 0.0
    %1369 = vmatpush2.xpose.msra.mxu0 0.0
    %1370 = vmatprep.subr.mxu0 0.0
    %1371 = vmatpush2.xpose.msra.mxu0 0.0
    %1372 = vmatprep.subr.mxu0 0.0
    %1373 = vmatpush2.xpose.msra.mxu0 0.0
    %1374 = vmatprep.subr.mxu0 0.0
    %1375 = vmatpush2.xpose.msra.mxu0 0.0
    %1376 = vmatprep.subr.mxu0 0.0
    %1377 = vmatpush2.xpose.msra.mxu0 0.0
    %1378 = vmatprep.subr.mxu0 0.0
    %1379 = vmatpush2.xpose.msra.mxu0 0.0
    %1380 = vmatprep.subr.mxu0 0.0
    %1381 = vmatpush2.xpose.msra.mxu0 0.0
    %1382 = vmatprep.subr.mxu0 0.0
    %1383 = vmatpush2.xpose.msra.mxu0 0.0
    %1384 = vmatprep.subr.mxu0 0.0
    %1385 = vmatpush2.xpose.msra.mxu0 0.0
    %1386 = vmatprep.mubr.f32.mxu0 0.0
    %1387 = vmatmul.mubr.f32.gmra.mxu0 %v1311
    %v1388 = vpop.f32.mrf.mxu0
    %v1389 = vadd.f32 %v31, %v1388
    %v1390 = vpop.f32.mrf.mxu0
    %1391 = vmatprep.mubr.f32.mxu0 0.0
    %1392 = vmatmul.mubr.f32.gmra.mxu0 %v1314
    %v1393 = vpop.f32.mrf.mxu0
    %v1394 = vadd.f32 %v32, %v1393
    %v1395 = vpop.f32.mrf.mxu0
    %1396 = vdwg.mxu0
    %v1397 = vsel %vm371, %v1389, -inf
    %1398 = vmax.xlane.f32.xlu0 %v1397
    %v1399 = vpop.xlane.xlu0 %1398
    %v1400 = vsel %vm371, %v1394, -inf
    %1401 = vmax.xlane.f32.xlu0 %v1400
    %v1402 = vpop.xlane.xlu0 %1401
    %v1403 = vsub.f32 %v1389, %v1399
    %v1404 = vsub.f32 %v1394, %v1402
    %v1405 = vmul.f32 %v1403, 1.442695
    %v1406 = vpow.pop %v1405
    %v1407 = vmul.f32 %v1404, 1.442695
    %v1408 = vpow.pop %v1407
    %v1409 = vsel %vm371, %v1406, 0.0
    %1410 = vadd.xlane.f32.xlu0 %v1409
    %v1411 = vpop.xlane.xlu0 %1410
    %v1412 = vsel %vm371, %v1408, 0.0
    %1413 = vadd.xlane.f32.xlu0 %v1412
    %v1414 = vpop.xlane.xlu0 %1413
    %v1415 = vrcp.pop %v1411
    %v1416 = vrcp.pop %v1414
    %v1417 = vmul.f32 %v1406, %v1415
    %v1418 = vmul.f32 %v1408, %v1416
    %v1420 = vsel %vm371, %v1417, 0
    %v1423 = vsel %vm371, %v1418, 0
    %1425 = vmatprep.subr.mxu0 0.0
    %1426 = vmatpush1.msra.mxu0 0.0
    %1427 = vmatprep.subr.mxu0 0.0
    %1428 = vmatpush1.msra.mxu0 0.0
    %1429 = vmatprep.subr.mxu0 0.0
    %1430 = vmatpush1.msra.mxu0 0.0
    %1431 = vmatprep.subr.mxu0 0.0
    %1432 = vmatpush1.msra.mxu0 0.0
    %1433 = vmatprep.subr.mxu0 0.0
    %1434 = vmatpush1.msra.mxu0 0.0
    %1435 = vmatprep.subr.mxu0 0.0
    %1436 = vmatpush1.msra.mxu0 0.0
    %1437 = vmatprep.subr.mxu0 0.0
    %1438 = vmatpush1.msra.mxu0 0.0
    %1439 = vmatprep.subr.mxu0 0.0
    %1440 = vmatpush1.msra.mxu0 0.0
    %1441 = vmatprep.subr.mxu0 0.0
    %1442 = vmatpush1.msra.mxu0 0.0
    %1443 = vmatprep.subr.mxu0 0.0
    %1444 = vmatpush1.msra.mxu0 0.0
    %1445 = vmatprep.subr.mxu0 0.0
    %1446 = vmatpush1.msra.mxu0 0.0
    %1447 = vmatprep.subr.mxu0 0.0
    %1448 = vmatpush1.msra.mxu0 0.0
    %1449 = vmatprep.subr.mxu0 0.0
    %1450 = vmatpush1.msra.mxu0 0.0
    %1451 = vmatprep.subr.mxu0 0.0
    %1452 = vmatpush1.msra.mxu0 0.0
    %1453 = vmatprep.subr.mxu0 0.0
    %1454 = vmatpush1.msra.mxu0 %v1307
    %1455 = vmatprep.subr.mxu0 0.0
    %1456 = vmatpush1.msra.mxu0 %v1302
    %1457 = vmatprep.subr.mxu0 0.0
    %1458 = vmatpush2.msra.mxu0 0.0
    %1459 = vmatprep.subr.mxu0 0.0
    %1460 = vmatpush2.msra.mxu0 0.0
    %1461 = vmatprep.subr.mxu0 0.0
    %1462 = vmatpush2.msra.mxu0 0.0
    %1463 = vmatprep.subr.mxu0 0.0
    %1464 = vmatpush2.msra.mxu0 0.0
    %1465 = vmatprep.subr.mxu0 0.0
    %1466 = vmatpush2.msra.mxu0 0.0
    %1467 = vmatprep.subr.mxu0 0.0
    %1468 = vmatpush2.msra.mxu0 0.0
    %1469 = vmatprep.subr.mxu0 0.0
    %1470 = vmatpush2.msra.mxu0 0.0
    %1471 = vmatprep.subr.mxu0 0.0
    %1472 = vmatpush2.msra.mxu0 0.0
    %1473 = vmatprep.subr.mxu0 0.0
    %1474 = vmatpush2.msra.mxu0 0.0
    %1475 = vmatprep.subr.mxu0 0.0
    %1476 = vmatpush2.msra.mxu0 0.0
    %1477 = vmatprep.subr.mxu0 0.0
    %1478 = vmatpush2.msra.mxu0 0.0
    %1479 = vmatprep.subr.mxu0 0.0
    %1480 = vmatpush2.msra.mxu0 0.0
    %1481 = vmatprep.subr.mxu0 0.0
    %1482 = vmatpush2.msra.mxu0 0.0
    %1483 = vmatprep.subr.mxu0 0.0
    %1484 = vmatpush2.msra.mxu0 0.0
    %1485 = vmatprep.subr.mxu0 0.0
    %1486 = vmatpush2.msra.mxu0 0.0
    %1487 = vmatprep.subr.mxu0 0.0
    %1488 = vmatpush2.msra.mxu0 0.0
    %1489 = vmatprep.mubr.f32.mxu0 0.0
    %1490 = vmatmul.mubr.f32.gmra.mxu0 %v1420
    %v1491 = vpop.f32.mrf.mxu0
    %v1492 = vadd.f32 0.0, %v1491
    %v1493 = vpop.f32.mrf.mxu0
    %1494 = vmatprep.mubr.f32.mxu0 0.0
    %1495 = vmatmul.mubr.f32.gmra.mxu0 %v1423
    %v1496 = vpop.f32.mrf.mxu0
    %v1497 = vadd.f32 0.0, %v1496
    %v1498 = vpop.f32.mrf.mxu0
    %1499 = vdwg.mxu0
    %s1500 = scalar_lea.vmem %s4, 16
    %v1501 = vld [vmem:[%s1500] sm:$0xff]
    %v1503 = vsel %vm283, %v1492, 0
    %v1506 = vsel %vm283, %v1497, 0
    %1508 = vmatprep.subr.mxu0 0.0
    %1509 = vmatpush1.msra.mxu0 0.0
    %1510 = vmatprep.subr.mxu0 0.0
    %1511 = vmatpush1.msra.mxu0 0.0
    %1512 = vmatprep.subr.mxu0 0.0
    %1513 = vmatpush1.msra.mxu0 0.0
    %1514 = vmatprep.subr.mxu0 0.0
    %1515 = vmatpush1.msra.mxu0 0.0
    %1516 = vmatprep.subr.mxu0 0.0
    %1517 = vmatpush1.msra.mxu0 0.0
    %1518 = vmatprep.subr.mxu0 0.0
    %1519 = vmatpush1.msra.mxu0 0.0
    %1520 = vmatprep.subr.mxu0 0.0
    %1521 = vmatpush1.msra.mxu0 0.0
    %1522 = vmatprep.subr.mxu0 0.0
    %1523 = vmatpush1.msra.mxu0 0.0
    %1524 = vmatprep.subr.mxu0 0.0
    %1525 = vmatpush1.msra.mxu0 0.0
    %1526 = vmatprep.subr.mxu0 0.0
    %1527 = vmatpush1.msra.mxu0 0.0
    %1528 = vmatprep.subr.mxu0 0.0
    %1529 = vmatpush1.msra.mxu0 0.0
    %1530 = vmatprep.subr.mxu0 0.0
    %1531 = vmatpush1.msra.mxu0 0.0
    %1532 = vmatprep.subr.mxu0 0.0
    %1533 = vmatpush1.msra.mxu0 0.0
    %1534 = vmatprep.subr.mxu0 0.0
    %1535 = vmatpush1.msra.mxu0 0.0
    %1536 = vmatprep.subr.mxu0 0.0
    %1537 = vmatpush1.msra.mxu0 0.0
    %1538 = vmatprep.subr.mxu0 0.0
    %1539 = vmatpush1.msra.mxu0 %v1501
    %1540 = vmatprep.subr.mxu0 0.0
    %1541 = vmatpush2.msra.mxu0 0.0
    %1542 = vmatprep.subr.mxu0 0.0
    %1543 = vmatpush2.msra.mxu0 0.0
    %1544 = vmatprep.subr.mxu0 0.0
    %1545 = vmatpush2.msra.mxu0 0.0
    %1546 = vmatprep.subr.mxu0 0.0
    %1547 = vmatpush2.msra.mxu0 0.0
    %1548 = vmatprep.subr.mxu0 0.0
    %1549 = vmatpush2.msra.mxu0 0.0
    %1550 = vmatprep.subr.mxu0 0.0
    %1551 = vmatpush2.msra.mxu0 0.0
    %1552 = vmatprep.subr.mxu0 0.0
    %1553 = vmatpush2.msra.mxu0 0.0
    %1554 = vmatprep.subr.mxu0 0.0
    %1555 = vmatpush2.msra.mxu0 0.0
    %1556 = vmatprep.subr.mxu0 0.0
    %1557 = vmatpush2.msra.mxu0 0.0
    %1558 = vmatprep.subr.mxu0 0.0
    %1559 = vmatpush2.msra.mxu0 0.0
    %1560 = vmatprep.subr.mxu0 0.0
    %1561 = vmatpush2.msra.mxu0 0.0
    %1562 = vmatprep.subr.mxu0 0.0
    %1563 = vmatpush2.msra.mxu0 0.0
    %1564 = vmatprep.subr.mxu0 0.0
    %1565 = vmatpush2.msra.mxu0 0.0
    %1566 = vmatprep.subr.mxu0 0.0
    %1567 = vmatpush2.msra.mxu0 0.0
    %1568 = vmatprep.subr.mxu0 0.0
    %1569 = vmatpush2.msra.mxu0 0.0
    %1570 = vmatprep.subr.mxu0 0.0
    %1571 = vmatpush2.msra.mxu0 0.0
    %1572 = vmatprep.mubr.f32.mxu0 0.0
    %1573 = vmatmul.mubr.f32.gmra.mxu0 %v1503
    %v1574 = vpop.f32.mrf.mxu0
    %v1575 = vadd.f32 0.0, %v1574
    %v1576 = vpop.f32.mrf.mxu0
    %1577 = vmatprep.mubr.f32.mxu0 0.0
    %1578 = vmatmul.mubr.f32.gmra.mxu0 %v1506
    %v1579 = vpop.f32.mrf.mxu0
    %v1580 = vadd.f32 0.0, %v1579
    %v1581 = vpop.f32.mrf.mxu0
    %1582 = vdwg.mxu0
    %v1583 = vadd.f32 %v1062, %v1575
    %v1584 = vadd.f32 %v1067, %v1580
    %s1585 = scalar_lea.vmem %s1, 96
    %v1586 = vld [vmem:[%s1585] sm:$0xff]
    %v1587 = vld [vmem:[%s1585 + $0x8] sm:$0xff]
    %v1588 = vld [vmem:[%s1585 + $0x10] sm:$0xff]
    %v1589 = vld [vmem:[%s1585 + $0x18] sm:$0xff]
    %1590 = vmatprep.subr.mxu0 0.0
    %1591 = vmatpush1.msra.mxu0 0.0
    %1592 = vmatprep.subr.mxu0 0.0
    %1593 = vmatpush1.msra.mxu0 0.0
    %1594 = vmatprep.subr.mxu0 0.0
    %1595 = vmatpush1.msra.mxu0 0.0
    %1596 = vmatprep.subr.mxu0 0.0
    %1597 = vmatpush1.msra.mxu0 0.0
    %1598 = vmatprep.subr.mxu0 0.0
    %1599 = vmatpush1.msra.mxu0 0.0
    %1600 = vmatprep.subr.mxu0 0.0
    %1601 = vmatpush1.msra.mxu0 0.0
    %1602 = vmatprep.subr.mxu0 0.0
    %1603 = vmatpush1.msra.mxu0 0.0
    %1604 = vmatprep.subr.mxu0 0.0
    %1605 = vmatpush1.msra.mxu0 0.0
    %1606 = vmatprep.subr.mxu0 0.0
    %1607 = vmatpush1.msra.mxu0 0.0
    %1608 = vmatprep.subr.mxu0 0.0
    %1609 = vmatpush1.msra.mxu0 0.0
    %1610 = vmatprep.subr.mxu0 0.0
    %1611 = vmatpush1.msra.mxu0 0.0
    %1612 = vmatprep.subr.mxu0 0.0
    %1613 = vmatpush1.msra.mxu0 0.0
    %1614 = vmatprep.subr.mxu0 0.0
    %1615 = vmatpush1.msra.mxu0 %v1589
    %1616 = vmatprep.subr.mxu0 0.0
    %1617 = vmatpush1.msra.mxu0 %v1588
    %1618 = vmatprep.subr.mxu0 0.0
    %1619 = vmatpush1.msra.mxu0 %v1587
    %1620 = vmatprep.subr.mxu0 0.0
    %1621 = vmatpush1.msra.mxu0 %v1586
    %1622 = vmatprep.subr.mxu0 0.0
    %1623 = vmatpush2.msra.mxu0 0.0
    %1624 = vmatprep.subr.mxu0 0.0
    %1625 = vmatpush2.msra.mxu0 0.0
    %1626 = vmatprep.subr.mxu0 0.0
    %1627 = vmatpush2.msra.mxu0 0.0
    %1628 = vmatprep.subr.mxu0 0.0
    %1629 = vmatpush2.msra.mxu0 0.0
    %1630 = vmatprep.subr.mxu0 0.0
    %1631 = vmatpush2.msra.mxu0 0.0
    %1632 = vmatprep.subr.mxu0 0.0
    %1633 = vmatpush2.msra.mxu0 0.0
    %1634 = vmatprep.subr.mxu0 0.0
    %1635 = vmatpush2.msra.mxu0 0.0
    %1636 = vmatprep.subr.mxu0 0.0
    %1637 = vmatpush2.msra.mxu0 0.0
    %1638 = vmatprep.subr.mxu0 0.0
    %1639 = vmatpush2.msra.mxu0 0.0
    %1640 = vmatprep.subr.mxu0 0.0
    %1641 = vmatpush2.msra.mxu0 0.0
    %1642 = vmatprep.subr.mxu0 0.0
    %1643 = vmatpush2.msra.mxu0 0.0
    %1644 = vmatprep.subr.mxu0 0.0
    %1645 = vmatpush2.msra.mxu0 0.0
    %1646 = vmatprep.subr.mxu0 0.0
    %1647 = vmatpush2.msra.mxu0 0.0
    %1648 = vmatprep.subr.mxu0 0.0
    %1649 = vmatpush2.msra.mxu0 0.0
    %1650 = vmatprep.subr.mxu0 0.0
    %1651 = vmatpush2.msra.mxu0 0.0
    %1652 = vmatprep.subr.mxu0 0.0
    %1653 = vmatpush2.msra.mxu0 0.0
    %1654 = vmatprep.mubr.f32.mxu0 0.0
    %1655 = vmatmul.mubr.f32.gmra.mxu0 %v39
    %v1656 = vpop.f32.mrf.mxu0
    %v1657 = vadd.f32 0.0, %v1656
    %v1658 = vpop.f32.mrf.mxu0
    %1659 = vmatprep.mubr.f32.mxu0 0.0
    %1660 = vmatmul.mubr.f32.gmra.mxu0 %v42
    %v1661 = vpop.f32.mrf.mxu0
    %v1662 = vadd.f32 0.0, %v1661
    %v1663 = vpop.f32.mrf.mxu0
    %1664 = vdwg.mxu0
    %s1665 = scalar_lea.vmem %s2, 96
    %v1666 = vld [vmem:[%s1665] sm:$0xff]
    %v1667 = vld [vmem:[%s1665 + $0x8] sm:$0xff]
    %v1668 = vld [vmem:[%s1665 + $0x10] sm:$0xff]
    %v1669 = vld [vmem:[%s1665 + $0x18] sm:$0xff]
    %1670 = vmatprep.subr.mxu0 0.0
    %1671 = vmatpush1.msra.mxu0 0.0
    %1672 = vmatprep.subr.mxu0 0.0
    %1673 = vmatpush1.msra.mxu0 0.0
    %1674 = vmatprep.subr.mxu0 0.0
    %1675 = vmatpush1.msra.mxu0 0.0
    %1676 = vmatprep.subr.mxu0 0.0
    %1677 = vmatpush1.msra.mxu0 0.0
    %1678 = vmatprep.subr.mxu0 0.0
    %1679 = vmatpush1.msra.mxu0 0.0
    %1680 = vmatprep.subr.mxu0 0.0
    %1681 = vmatpush1.msra.mxu0 0.0
    %1682 = vmatprep.subr.mxu0 0.0
    %1683 = vmatpush1.msra.mxu0 0.0
    %1684 = vmatprep.subr.mxu0 0.0
    %1685 = vmatpush1.msra.mxu0 0.0
    %1686 = vmatprep.subr.mxu0 0.0
    %1687 = vmatpush1.msra.mxu0 0.0
    %1688 = vmatprep.subr.mxu0 0.0
    %1689 = vmatpush1.msra.mxu0 0.0
    %1690 = vmatprep.subr.mxu0 0.0
    %1691 = vmatpush1.msra.mxu0 0.0
    %1692 = vmatprep.subr.mxu0 0.0
    %1693 = vmatpush1.msra.mxu0 0.0
    %1694 = vmatprep.subr.mxu0 0.0
    %1695 = vmatpush1.msra.mxu0 %v1669
    %1696 = vmatprep.subr.mxu0 0.0
    %1697 = vmatpush1.msra.mxu0 %v1668
    %1698 = vmatprep.subr.mxu0 0.0
    %1699 = vmatpush1.msra.mxu0 %v1667
    %1700 = vmatprep.subr.mxu0 0.0
    %1701 = vmatpush1.msra.mxu0 %v1666
    %1702 = vmatprep.subr.mxu0 0.0
    %1703 = vmatpush2.msra.mxu0 0.0
    %1704 = vmatprep.subr.mxu0 0.0
    %1705 = vmatpush2.msra.mxu0 0.0
    %1706 = vmatprep.subr.mxu0 0.0
    %1707 = vmatpush2.msra.mxu0 0.0
    %1708 = vmatprep.subr.mxu0 0.0
    %1709 = vmatpush2.msra.mxu0 0.0
    %1710 = vmatprep.subr.mxu0 0.0
    %1711 = vmatpush2.msra.mxu0 0.0
    %1712 = vmatprep.subr.mxu0 0.0
    %1713 = vmatpush2.msra.mxu0 0.0
    %1714 = vmatprep.subr.mxu0 0.0
    %1715 = vmatpush2.msra.mxu0 0.0
    %1716 = vmatprep.subr.mxu0 0.0
    %1717 = vmatpush2.msra.mxu0 0.0
    %1718 = vmatprep.subr.mxu0 0.0
    %1719 = vmatpush2.msra.mxu0 0.0
    %1720 = vmatprep.subr.mxu0 0.0
    %1721 = vmatpush2.msra.mxu0 0.0
    %1722 = vmatprep.subr.mxu0 0.0
    %1723 = vmatpush2.msra.mxu0 0.0
    %1724 = vmatprep.subr.mxu0 0.0
    %1725 = vmatpush2.msra.mxu0 0.0
    %1726 = vmatprep.subr.mxu0 0.0
    %1727 = vmatpush2.msra.mxu0 0.0
    %1728 = vmatprep.subr.mxu0 0.0
    %1729 = vmatpush2.msra.mxu0 0.0
    %1730 = vmatprep.subr.mxu0 0.0
    %1731 = vmatpush2.msra.mxu0 0.0
    %1732 = vmatprep.subr.mxu0 0.0
    %1733 = vmatpush2.msra.mxu0 0.0
    %1734 = vmatprep.mubr.f32.mxu0 0.0
    %1735 = vmatmul.mubr.f32.gmra.mxu0 %v124
    %v1736 = vpop.f32.mrf.mxu0
    %v1737 = vadd.f32 0.0, %v1736
    %v1738 = vpop.f32.mrf.mxu0
    %1739 = vmatprep.mubr.f32.mxu0 0.0
    %1740 = vmatmul.mubr.f32.gmra.mxu0 %v127
    %v1741 = vpop.f32.mrf.mxu0
    %v1742 = vadd.f32 0.0, %v1741
    %v1743 = vpop.f32.mrf.mxu0
    %1744 = vdwg.mxu0
    %s1745 = scalar_lea.vmem %s3, 96
    %v1746 = vld [vmem:[%s1745] sm:$0xff]
    %v1747 = vld [vmem:[%s1745 + $0x8] sm:$0xff]
    %v1748 = vld [vmem:[%s1745 + $0x10] sm:$0xff]
    %v1749 = vld [vmem:[%s1745 + $0x18] sm:$0xff]
    %1750 = vmatprep.subr.mxu0 0.0
    %1751 = vmatpush1.msra.mxu0 0.0
    %1752 = vmatprep.subr.mxu0 0.0
    %1753 = vmatpush1.msra.mxu0 0.0
    %1754 = vmatprep.subr.mxu0 0.0
    %1755 = vmatpush1.msra.mxu0 0.0
    %1756 = vmatprep.subr.mxu0 0.0
    %1757 = vmatpush1.msra.mxu0 0.0
    %1758 = vmatprep.subr.mxu0 0.0
    %1759 = vmatpush1.msra.mxu0 0.0
    %1760 = vmatprep.subr.mxu0 0.0
    %1761 = vmatpush1.msra.mxu0 0.0
    %1762 = vmatprep.subr.mxu0 0.0
    %1763 = vmatpush1.msra.mxu0 0.0
    %1764 = vmatprep.subr.mxu0 0.0
    %1765 = vmatpush1.msra.mxu0 0.0
    %1766 = vmatprep.subr.mxu0 0.0
    %1767 = vmatpush1.msra.mxu0 0.0
    %1768 = vmatprep.subr.mxu0 0.0
    %1769 = vmatpush1.msra.mxu0 0.0
    %1770 = vmatprep.subr.mxu0 0.0
    %1771 = vmatpush1.msra.mxu0 0.0
    %1772 = vmatprep.subr.mxu0 0.0
    %1773 = vmatpush1.msra.mxu0 0.0
    %1774 = vmatprep.subr.mxu0 0.0
    %1775 = vmatpush1.msra.mxu0 %v1749
    %1776 = vmatprep.subr.mxu0 0.0
    %1777 = vmatpush1.msra.mxu0 %v1748
    %1778 = vmatprep.subr.mxu0 0.0
    %1779 = vmatpush1.msra.mxu0 %v1747
    %1780 = vmatprep.subr.mxu0 0.0
    %1781 = vmatpush1.msra.mxu0 %v1746
    %1782 = vmatprep.subr.mxu0 0.0
    %1783 = vmatpush2.msra.mxu0 0.0
    %1784 = vmatprep.subr.mxu0 0.0
    %1785 = vmatpush2.msra.mxu0 0.0
    %1786 = vmatprep.subr.mxu0 0.0
    %1787 = vmatpush2.msra.mxu0 0.0
    %1788 = vmatprep.subr.mxu0 0.0
    %1789 = vmatpush2.msra.mxu0 0.0
    %1790 = vmatprep.subr.mxu0 0.0
    %1791 = vmatpush2.msra.mxu0 0.0
    %1792 = vmatprep.subr.mxu0 0.0
    %1793 = vmatpush2.msra.mxu0 0.0
    %1794 = vmatprep.subr.mxu0 0.0
    %1795 = vmatpush2.msra.mxu0 0.0
    %1796 = vmatprep.subr.mxu0 0.0
    %1797 = vmatpush2.msra.mxu0 0.0
    %1798 = vmatprep.subr.mxu0 0.0
    %1799 = vmatpush2.msra.mxu0 0.0
    %1800 = vmatprep.subr.mxu0 0.0
    %1801 = vmatpush2.msra.mxu0 0.0
    %1802 = vmatprep.subr.mxu0 0.0
    %1803 = vmatpush2.msra.mxu0 0.0
    %1804 = vmatprep.subr.mxu0 0.0
    %1805 = vmatpush2.msra.mxu0 0.0
    %1806 = vmatprep.subr.mxu0 0.0
    %1807 = vmatpush2.msra.mxu0 0.0
    %1808 = vmatprep.subr.mxu0 0.0
    %1809 = vmatpush2.msra.mxu0 0.0
    %1810 = vmatprep.subr.mxu0 0.0
    %1811 = vmatpush2.msra.mxu0 0.0
    %1812 = vmatprep.subr.mxu0 0.0
    %1813 = vmatpush2.msra.mxu0 0.0
    %1814 = vmatprep.mubr.f32.mxu0 0.0
    %1815 = vmatmul.mubr.f32.gmra.mxu0 %v124
    %v1816 = vpop.f32.mrf.mxu0
    %v1817 = vadd.f32 0.0, %v1816
    %v1818 = vpop.f32.mrf.mxu0
    %1819 = vmatprep.mubr.f32.mxu0 0.0
    %1820 = vmatmul.mubr.f32.gmra.mxu0 %v127
    %v1821 = vpop.f32.mrf.mxu0
    %v1822 = vadd.f32 0.0, %v1821
    %v1823 = vpop.f32.mrf.mxu0
    %1824 = vdwg.mxu0
    %v1826 = vsel %vm283, %v1657, 0
    %v1829 = vsel %vm283, %v1662, 0
    %v1832 = vsel %vm283, %v1737, 0
    %v1835 = vsel %vm283, %v1742, 0
    %1837 = vmatprep.subr.mxu0 0.0
    %1838 = vmatpush1.xpose.msra.mxu0 0.0
    %1839 = vmatprep.subr.mxu0 0.0
    %1840 = vmatpush1.xpose.msra.mxu0 0.0
    %1841 = vmatprep.subr.mxu0 0.0
    %1842 = vmatpush1.xpose.msra.mxu0 0.0
    %1843 = vmatprep.subr.mxu0 0.0
    %1844 = vmatpush1.xpose.msra.mxu0 0.0
    %1845 = vmatprep.subr.mxu0 0.0
    %1846 = vmatpush1.xpose.msra.mxu0 0.0
    %1847 = vmatprep.subr.mxu0 0.0
    %1848 = vmatpush1.xpose.msra.mxu0 0.0
    %1849 = vmatprep.subr.mxu0 0.0
    %1850 = vmatpush1.xpose.msra.mxu0 0.0
    %1851 = vmatprep.subr.mxu0 0.0
    %1852 = vmatpush1.xpose.msra.mxu0 0.0
    %1853 = vmatprep.subr.mxu0 0.0
    %1854 = vmatpush1.xpose.msra.mxu0 0.0
    %1855 = vmatprep.subr.mxu0 0.0
    %1856 = vmatpush1.xpose.msra.mxu0 0.0
    %1857 = vmatprep.subr.mxu0 0.0
    %1858 = vmatpush1.xpose.msra.mxu0 0.0
    %1859 = vmatprep.subr.mxu0 0.0
    %1860 = vmatpush1.xpose.msra.mxu0 0.0
    %1861 = vmatprep.subr.mxu0 0.0
    %1862 = vmatpush1.xpose.msra.mxu0 0.0
    %1863 = vmatprep.subr.mxu0 0.0
    %1864 = vmatpush1.xpose.msra.mxu0 0.0
    %1865 = vmatprep.subr.mxu0 0.0
    %1866 = vmatpush1.xpose.msra.mxu0 %v1835
    %1867 = vmatprep.subr.mxu0 0.0
    %1868 = vmatpush1.xpose.msra.mxu0 %v1832
    %1869 = vmatprep.subr.mxu0 0.0
    %1870 = vmatpush2.xpose.msra.mxu0 0.0
    %1871 = vmatprep.subr.mxu0 0.0
    %1872 = vmatpush2.xpose.msra.mxu0 0.0
    %1873 = vmatprep.subr.mxu0 0.0
    %1874 = vmatpush2.xpose.msra.mxu0 0.0
    %1875 = vmatprep.subr.mxu0 0.0
    %1876 = vmatpush2.xpose.msra.mxu0 0.0
    %1877 = vmatprep.subr.mxu0 0.0
    %1878 = vmatpush2.xpose.msra.mxu0 0.0
    %1879 = vmatprep.subr.mxu0 0.0
    %1880 = vmatpush2.xpose.msra.mxu0 0.0
    %1881 = vmatprep.subr.mxu0 0.0
    %1882 = vmatpush2.xpose.msra.mxu0 0.0
    %1883 = vmatprep.subr.mxu0 0.0
    %1884 = vmatpush2.xpose.msra.mxu0 0.0
    %1885 = vmatprep.subr.mxu0 0.0
    %1886 = vmatpush2.xpose.msra.mxu0 0.0
    %1887 = vmatprep.subr.mxu0 0.0
    %1888 = vmatpush2.xpose.msra.mxu0 0.0
    %1889 = vmatprep.subr.mxu0 0.0
    %1890 = vmatpush2.xpose.msra.mxu0 0.0
    %1891 = vmatprep.subr.mxu0 0.0
    %1892 = vmatpush2.xpose.msra.mxu0 0.0
    %1893 = vmatprep.subr.mxu0 0.0
    %1894 = vmatpush2.xpose.msra.mxu0 0.0
    %1895 = vmatprep.subr.mxu0 0.0
    %1896 = vmatpush2.xpose.msra.mxu0 0.0
    %1897 = vmatprep.subr.mxu0 0.0
    %1898 = vmatpush2.xpose.msra.mxu0 0.0
    %1899 = vmatprep.subr.mxu0 0.0
    %1900 = vmatpush2.xpose.msra.mxu0 0.0
    %1901 = vmatprep.mubr.f32.mxu0 0.0
    %1902 = vmatmul.mubr.f32.gmra.mxu0 %v1826
    %v1903 = vpop.f32.mrf.mxu0
    %v1904 = vadd.f32 %v31, %v1903
    %v1905 = vpop.f32.mrf.mxu0
    %1906 = vmatprep.mubr.f32.mxu0 0.0
    %1907 = vmatmul.mubr.f32.gmra.mxu0 %v1829
    %v1908 = vpop.f32.mrf.mxu0
    %v1909 = vadd.f32 %v32, %v1908
    %v1910 = vpop.f32.mrf.mxu0
    %1911 = vdwg.mxu0
    %v1912 = vsel %vm371, %v1904, -inf
    %1913 = vmax.xlane.f32.xlu0 %v1912
    %v1914 = vpop.xlane.xlu0 %1913
    %v1915 = vsel %vm371, %v1909, -inf
    %1916 = vmax.xlane.f32.xlu0 %v1915
    %v1917 = vpop.xlane.xlu0 %1916
    %v1918 = vsub.f32 %v1904, %v1914
    %v1919 = vsub.f32 %v1909, %v1917
    %v1920 = vmul.f32 %v1918, 1.442695
    %v1921 = vpow.pop %v1920
    %v1922 = vmul.f32 %v1919, 1.442695
    %v1923 = vpow.pop %v1922
    %v1924 = vsel %vm371, %v1921, 0.0
    %1925 = vadd.xlane.f32.xlu0 %v1924
    %v1926 = vpop.xlane.xlu0 %1925
    %v1927 = vsel %vm371, %v1923, 0.0
    %1928 = vadd.xlane.f32.xlu0 %v1927
    %v1929 = vpop.xlane.xlu0 %1928
    %v1930 = vrcp.pop %v1926
    %v1931 = vrcp.pop %v1929
    %v1932 = vmul.f32 %v1921, %v1930
    %v1933 = vmul.f32 %v1923, %v1931
    %v1935 = vsel %vm371, %v1932, 0
    %v1938 = vsel %vm371, %v1933, 0
    %1940 = vmatprep.subr.mxu0 0.0
    %1941 = vmatpush1.msra.mxu0 0.0
    %1942 = vmatprep.subr.mxu0 0.0
    %1943 = vmatpush1.msra.mxu0 0.0
    %1944 = vmatprep.subr.mxu0 0.0
    %1945 = vmatpush1.msra.mxu0 0.0
    %1946 = vmatprep.subr.mxu0 0.0
    %1947 = vmatpush1.msra.mxu0 0.0
    %1948 = vmatprep.subr.mxu0 0.0
    %1949 = vmatpush1.msra.mxu0 0.0
    %1950 = vmatprep.subr.mxu0 0.0
    %1951 = vmatpush1.msra.mxu0 0.0
    %1952 = vmatprep.subr.mxu0 0.0
    %1953 = vmatpush1.msra.mxu0 0.0
    %1954 = vmatprep.subr.mxu0 0.0
    %1955 = vmatpush1.msra.mxu0 0.0
    %1956 = vmatprep.subr.mxu0 0.0
    %1957 = vmatpush1.msra.mxu0 0.0
    %1958 = vmatprep.subr.mxu0 0.0
    %1959 = vmatpush1.msra.mxu0 0.0
    %1960 = vmatprep.subr.mxu0 0.0
    %1961 = vmatpush1.msra.mxu0 0.0
    %1962 = vmatprep.subr.mxu0 0.0
    %1963 = vmatpush1.msra.mxu0 0.0
    %1964 = vmatprep.subr.mxu0 0.0
    %1965 = vmatpush1.msra.mxu0 0.0
    %1966 = vmatprep.subr.mxu0 0.0
    %1967 = vmatpush1.msra.mxu0 0.0
    %1968 = vmatprep.subr.mxu0 0.0
    %1969 = vmatpush1.msra.mxu0 %v1822
    %1970 = vmatprep.subr.mxu0 0.0
    %1971 = vmatpush1.msra.mxu0 %v1817
    %1972 = vmatprep.subr.mxu0 0.0
    %1973 = vmatpush2.msra.mxu0 0.0
    %1974 = vmatprep.subr.mxu0 0.0
    %1975 = vmatpush2.msra.mxu0 0.0
    %1976 = vmatprep.subr.mxu0 0.0
    %1977 = vmatpush2.msra.mxu0 0.0
    %1978 = vmatprep.subr.mxu0 0.0
    %1979 = vmatpush2.msra.mxu0 0.0
    %1980 = vmatprep.subr.mxu0 0.0
    %1981 = vmatpush2.msra.mxu0 0.0
    %1982 = vmatprep.subr.mxu0 0.0
    %1983 = vmatpush2.msra.mxu0 0.0
    %1984 = vmatprep.subr.mxu0 0.0
    %1985 = vmatpush2.msra.mxu0 0.0
    %1986 = vmatprep.subr.mxu0 0.0
    %1987 = vmatpush2.msra.mxu0 0.0
    %1988 = vmatprep.subr.mxu0 0.0
    %1989 = vmatpush2.msra.mxu0 0.0
    %1990 = vmatprep.subr.mxu0 0.0
    %1991 = vmatpush2.msra.mxu0 0.0
    %1992 = vmatprep.subr.mxu0 0.0
    %1993 = vmatpush2.msra.mxu0 0.0
    %1994 = vmatprep.subr.mxu0 0.0
    %1995 = vmatpush2.msra.mxu0 0.0
    %1996 = vmatprep.subr.mxu0 0.0
    %1997 = vmatpush2.msra.mxu0 0.0
    %1998 = vmatprep.subr.mxu0 0.0
    %1999 = vmatpush2.msra.mxu0 0.0
    %2000 = vmatprep.subr.mxu0 0.0
    %2001 = vmatpush2.msra.mxu0 0.0
    %2002 = vmatprep.subr.mxu0 0.0
    %2003 = vmatpush2.msra.mxu0 0.0
    %2004 = vmatprep.mubr.f32.mxu0 0.0
    %2005 = vmatmul.mubr.f32.gmra.mxu0 %v1935
    %v2006 = vpop.f32.mrf.mxu0
    %v2007 = vadd.f32 0.0, %v2006
    %v2008 = vpop.f32.mrf.mxu0
    %2009 = vmatprep.mubr.f32.mxu0 0.0
    %2010 = vmatmul.mubr.f32.gmra.mxu0 %v1938
    %v2011 = vpop.f32.mrf.mxu0
    %v2012 = vadd.f32 0.0, %v2011
    %v2013 = vpop.f32.mrf.mxu0
    %2014 = vdwg.mxu0
    %s2015 = scalar_lea.vmem %s4, 24
    %v2016 = vld [vmem:[%s2015] sm:$0xff]
    %v2018 = vsel %vm283, %v2007, 0
    %v2021 = vsel %vm283, %v2012, 0
    %2023 = vmatprep.subr.mxu0 0.0
    %2024 = vmatpush1.msra.mxu0 0.0
    %2025 = vmatprep.subr.mxu0 0.0
    %2026 = vmatpush1.msra.mxu0 0.0
    %2027 = vmatprep.subr.mxu0 0.0
    %2028 = vmatpush1.msra.mxu0 0.0
    %2029 = vmatprep.subr.mxu0 0.0
    %2030 = vmatpush1.msra.mxu0 0.0
    %2031 = vmatprep.subr.mxu0 0.0
    %2032 = vmatpush1.msra.mxu0 0.0
    %2033 = vmatprep.subr.mxu0 0.0
    %2034 = vmatpush1.msra.mxu0 0.0
    %2035 = vmatprep.subr.mxu0 0.0
    %2036 = vmatpush1.msra.mxu0 0.0
    %2037 = vmatprep.subr.mxu0 0.0
    %2038 = vmatpush1.msra.mxu0 0.0
    %2039 = vmatprep.subr.mxu0 0.0
    %2040 = vmatpush1.msra.mxu0 0.0
    %2041 = vmatprep.subr.mxu0 0.0
    %2042 = vmatpush1.msra.mxu0 0.0
    %2043 = vmatprep.subr.mxu0 0.0
    %2044 = vmatpush1.msra.mxu0 0.0
    %2045 = vmatprep.subr.mxu0 0.0
    %2046 = vmatpush1.msra.mxu0 0.0
    %2047 = vmatprep.subr.mxu0 0.0
    %2048 = vmatpush1.msra.mxu0 0.0
    %2049 = vmatprep.subr.mxu0 0.0
    %2050 = vmatpush1.msra.mxu0 0.0
    %2051 = vmatprep.subr.mxu0 0.0
    %2052 = vmatpush1.msra.mxu0 0.0
    %2053 = vmatprep.subr.mxu0 0.0
    %2054 = vmatpush1.msra.mxu0 %v2016
    %2055 = vmatprep.subr.mxu0 0.0
    %2056 = vmatpush2.msra.mxu0 0.0
    %2057 = vmatprep.subr.mxu0 0.0
    %2058 = vmatpush2.msra.mxu0 0.0
    %2059 = vmatprep.subr.mxu0 0.0
    %2060 = vmatpush2.msra.mxu0 0.0
    %2061 = vmatprep.subr.mxu0 0.0
    %2062 = vmatpush2.msra.mxu0 0.0
    %2063 = vmatprep.subr.mxu0 0.0
    %2064 = vmatpush2.msra.mxu0 0.0
    %2065 = vmatprep.subr.mxu0 0.0
    %2066 = vmatpush2.msra.mxu0 0.0
    %2067 = vmatprep.subr.mxu0 0.0
    %2068 = vmatpush2.msra.mxu0 0.0
    %2069 = vmatprep.subr.mxu0 0.0
    %2070 = vmatpush2.msra.mxu0 0.0
    %2071 = vmatprep.subr.mxu0 0.0
    %2072 = vmatpush2.msra.mxu0 0.0
    %2073 = vmatprep.subr.mxu0 0.0
    %2074 = vmatpush2.msra.mxu0 0.0
    %2075 = vmatprep.subr.mxu0 0.0
    %2076 = vmatpush2.msra.mxu0 0.0
    %2077 = vmatprep.subr.mxu0 0.0
    %2078 = vmatpush2.msra.mxu0 0.0
    %2079 = vmatprep.subr.mxu0 0.0
    %2080 = vmatpush2.msra.mxu0 0.0
    %2081 = vmatprep.subr.mxu0 0.0
    %2082 = vmatpush2.msra.mxu0 0.0
    %2083 = vmatprep.subr.mxu0 0.0
    %2084 = vmatpush2.msra.mxu0 0.0
    %2085 = vmatprep.subr.mxu0 0.0
    %2086 = vmatpush2.msra.mxu0 0.0
    %2087 = vmatprep.mubr.f32.mxu0 0.0
    %2088 = vmatmul.mubr.f32.gmra.mxu0 %v2018
    %v2089 = vpop.f32.mrf.mxu0
    %v2090 = vadd.f32 0.0, %v2089
    %v2091 = vpop.f32.mrf.mxu0
    %2092 = vmatprep.mubr.f32.mxu0 0.0
    %2093 = vmatmul.mubr.f32.gmra.mxu0 %v2021
    %v2094 = vpop.f32.mrf.mxu0
    %v2095 = vadd.f32 0.0, %v2094
    %v2096 = vpop.f32.mrf.mxu0
    %2097 = vdwg.mxu0
    %v2098 = vadd.f32 %v1583, %v2090
    %v2099 = vadd.f32 %v1584, %v2095
    %v2100 = vld [vmem:[%s5] sm:$0x1]
    %v2102 = vlaneseq
    %v2103 = vshrl.u32 %v2102, 7
    %v2104 = vsub.s32 0, %v2103
    %v2105 = vrot.slane %v2100, %v2104
    %v2107 = vadd.f32 %v2098, %v2105
    %v2108 = vadd.f32 %v2099, %v2105
    %2109 = vst.msk [vmem:[#allocation2] sm:$0xff] %vm37, %v2107
    %2110 = vst.msk [vmem:[#allocation2 + $0x8] sm:$0xff] %vm37, %v2108
    // Predicated region
    $region30: #{tpu_custom_call.1} parent=1 // pred_check
      _
    $region31: #{tpu_custom_call.1} parent=1 // pred_check_branch
      %2112 = sbr.rel (0) target = $region33
    $region32: #{tpu_custom_call.1} parent=1 // pred_region
      %s2114 = ssub.s32 256, 256
      %2115 = vsyncadd [#allocation3], %s2114
      %s2116 = sshll.u32 [#allocation2], 4
      %s2117 = int_to_ptr.vmem [resolvable:$true] %s2116
      %2122 = dma.vmem_to_hbm [thread:$0]  %s2117, 256, %s7, [#allocation3], 128, 128, 8
    $region33: #{tpu_custom_call.1} parent=1 // pred_fallthru
      _
    // Predicated region
    $region34: #{tpu_custom_call.1} parent=1 // pred_check
      _
    $region35: #{tpu_custom_call.1} parent=1 // pred_check_branch
      %2124 = sbr.rel (0) target = $region37
    $region36: #{tpu_custom_call.1} parent=1 // pred_region
      %2125 = dma.done [#allocation3], 256
    $region37: #{tpu_custom_call.1} parent=1 // pred_fallthru
      _
    %2126 = vsyncpa [#allocation3], 1

</llo_original>
